<compile_context>
chip_gen: v5e
topology: v5e:2x2
jax: 0.10.0
libtpu: 0.0.40
codegen_flags: <defaults>
</compile_context>

<pallas_src>
import functools
import math

import jax
import jax.numpy as jnp
from jax import lax
from jax.experimental import pallas as pl
from jax.experimental.pallas import tpu as pltpu

_LANE = 128


# ---------------------------------------------------------------------------
# Pallas kernel 1: LearnableWeights  --  out = x1 * w1 + x2 * w2
# ---------------------------------------------------------------------------
def _learnable_weights_kernel(w1_ref, w2_ref, x1_ref, x2_ref, o_ref):
    # w1/w2 are (1, 1) SMEM scalars; the hot path is a single fused VPU op.
    w1 = w1_ref[0, 0]
    w2 = w2_ref[0, 0]
    o_ref[...] = x1_ref[...] * w1 + x2_ref[...] * w2


def learnable_weights(x1, x2, w1, w2, *, tile_rows=2048, min_pallas_bytes=1 << 20):
    """Fused x1*w1 + x2*w2 (elementwise, HBM-bandwidth bound)."""
    assert x1.shape == x2.shape and x1.dtype == x2.dtype
    orig_shape = x1.shape
    n = x1.size
    itemsize = jnp.dtype(x1.dtype).itemsize
    w1 = jnp.asarray(w1, x1.dtype)
    w2 = jnp.asarray(w2, x1.dtype)

    # Small-input / ragged bypass: for tiny tensors (or element counts not
    # divisible by the 128-lane width) a single fused XLA elementwise op beats
    # kernel-launch + grid-step overhead, and it avoids any padding copies.
    if n * itemsize < min_pallas_bytes or n % _LANE != 0:
        return x1 * w1 + x2 * w2

    # Lane-dense slab view: pure metadata reshape, no HBM copy, no padding,
    # no output slice afterwards.
    rows = n // _LANE
    x1s = x1.reshape(rows, _LANE)
    x2s = x2.reshape(rows, _LANE)

    # Block sizing:
    #  * ~1 MiB per input block (2048 rows x 128 lanes x 4 B) amortizes the
    #    ~0.35 us per-grid-step overhead (85%+ of HBM roofline vs ~63% at 256).
    #  * cap each block at ~2 MiB so 3 arrays x 2 pipeline buffers stays far
    #    below scoped-VMEM defaults (16 MiB v5e / 32 MiB v6e,v7x; 64 MiB v7x phys).
    #  * keep >=2 grid steps so ("parallel",) can shard across v7x's 2 TCs.
    max_rows = max(8, (2 * 1024 * 1024) // (_LANE * itemsize))
    tile_rows = min(tile_rows, max_rows, rows)
    if rows >= 16:
        tile_rows = min(tile_rows, max(8, (rows // 2) // 8 * 8))

    grid = (pl.cdiv(rows, tile_rows),)   # ragged last block handled by Pallas

    w1s = w1.reshape(1, 1)
    w2s = w2.reshape(1, 1)

    out = pl.pallas_call(
        _learnable_weights_kernel,
        out_shape=jax.ShapeDtypeStruct((rows, _LANE), x1.dtype),
        grid_spec=pltpu.PrefetchScalarGridSpec(
            num_scalar_prefetch=0,
            grid=grid,
            in_specs=[
                pl.BlockSpec(memory_space=pltpu.SMEM),   # w1 scalar
                pl.BlockSpec(memory_space=pltpu.SMEM),   # w2 scalar
                pl.BlockSpec((tile_rows, _LANE), lambda i: (i, 0)),
                pl.BlockSpec((tile_rows, _LANE), lambda i: (i, 0)),
            ],
            out_specs=pl.BlockSpec((tile_rows, _LANE), lambda i: (i, 0)),
        ),
        compiler_params=pltpu.CompilerParams(
            dimension_semantics=("parallel",)),
        cost_estimate=pl.CostEstimate(
            flops=2 * n, transcendentals=0, bytes_accessed=3 * n * itemsize),
        # NOTE: input_output_aliases={2: 0} would also save the output
        # allocation, but it is a minor win and requires donating x1; omitted.
    )(w1s, w2s, x1s, x2s)

    return out.reshape(orig_shape)


# ---------------------------------------------------------------------------
# Pallas kernel 2: fused scaled-dot-product attention core
#   out = softmax(q @ k^T * scale) @ v      (per batch element, all heads)
# ---------------------------------------------------------------------------
def _attention_kernel(q_ref, k_ref, v_ref, o_ref, *, scale):
    q = q_ref[0]            # (H, N, D)
    k = k_ref[0]
    v = v_ref[0]
    s = jnp.einsum('hqd,hkd->hqk', q, k,
                   preferred_element_type=jnp.float32) * scale
    m = jnp.max(s, axis=-1, keepdims=True)
    p = jnp.exp(s - m)
    denom = jnp.sum(p, axis=-1, keepdims=True)
    out = jnp.einsum('hqk,hkd->hqd', p.astype(v.dtype), v,
                     preferred_element_type=jnp.float32)
    o_ref[0] = (out / denom).astype(o_ref.dtype)


def attention_core(q, k, v, *, scale):
    """q, k, v: (B, H, N, D) -> (B, H, N, D)."""
    B, H, N, D = q.shape
    kernel = functools.partial(_attention_kernel, scale=scale)
    spec = pl.BlockSpec((1, H, N, D), lambda b: (b, 0, 0, 0))
    return pl.pallas_call(
        kernel,
        out_shape=jax.ShapeDtypeStruct((B, H, N, D), q.dtype),
        grid_spec=pltpu.PrefetchScalarGridSpec(
            num_scalar_prefetch=0,
            grid=(B,),
            in_specs=[spec, spec, spec],
            out_specs=spec,
        ),
        compiler_params=pltpu.CompilerParams(
            dimension_semantics=("parallel",)),
    )(q, k, v)


# ---------------------------------------------------------------------------
# Module pieces (plain JAX around the Pallas kernels)
# ---------------------------------------------------------------------------
# TODO(synk): Linear/LayerNorm/GELU-MLP, adaptive avg/max pooling and bilinear
# resize are left to XLA (MXU/VPU already near roofline at these sizes) rather
# than bespoke Pallas kernels.
def adaptive_pool2d(x, out_h, out_w, pool_type):
    bs, c, in_h, in_w = x.shape
    if in_h > out_h or in_w > out_w:
        sh, sw = in_h // out_h, in_w // out_w
        kh = in_h - (out_h - 1) * sh
        kw = in_w - (out_w - 1) * sw
        if pool_type == 'avg':
            y = lax.reduce_window(x, jnp.array(0, x.dtype), lax.add,
                                  (1, 1, kh, kw), (1, 1, sh, sw), 'VALID')
            y = y / jnp.array(kh * kw, x.dtype)
        else:
            y = lax.reduce_window(x, jnp.array(-jnp.inf, x.dtype), lax.max,
                                  (1, 1, kh, kw), (1, 1, sh, sw), 'VALID')
        return y
    return x


def layer_norm(x, gamma, beta, eps=1e-5):
    mu = jnp.mean(x, axis=-1, keepdims=True)
    var = jnp.mean(jnp.square(x - mu), axis=-1, keepdims=True)
    return (x - mu) * lax.rsqrt(var + eps) * gamma + beta


def linear(x, w, b):
    return x @ w + b


def mlp(p, x):
    # TODO(synk): Dropout(resid_pdrop) is an eval-mode identity and is omitted.
    hid = jax.nn.gelu(linear(x, p['w1'], p['b1']), approximate=False)
    return linear(hid, p['w2'], p['b2'])


def cross_attention(p, rgb, ir, num_heads, use_pallas):
    b_s, nq, d_model = rgb.shape
    d_k = d_model // num_heads
    scale = 1.0 / math.sqrt(d_k)

    rgb_n = layer_norm(rgb, p['ln1_g'], p['ln1_b'])
    ir_n = layer_norm(ir, p['ln2_g'], p['ln2_b'])

    def heads(x):
        return x.reshape(b_s, nq, num_heads, d_k).transpose(0, 2, 1, 3)

    q_vis = heads(linear(rgb_n, p['w_q_vis'], p['b_q_vis']))
    k_vis = heads(linear(rgb_n, p['w_k_vis'], p['b_k_vis']))
    v_vis = heads(linear(rgb_n, p['w_v_vis'], p['b_v_vis']))
    q_ir = heads(linear(ir_n, p['w_q_ir'], p['b_q_ir']))
    k_ir = heads(linear(ir_n, p['w_k_ir'], p['b_k_ir']))
    v_ir = heads(linear(ir_n, p['w_v_ir'], p['b_v_ir']))

    if use_pallas:
        out_vis = attention_core(q_ir, k_vis, v_vis, scale=scale)
        out_ir = attention_core(q_vis, k_ir, v_ir, scale=scale)
    else:
        def ref_attn(q, k, v):
            s = jnp.einsum('bhqd,bhkd->bhqk', q, k) * scale
            return jnp.einsum('bhqk,bhkd->bhqd', jax.nn.softmax(s, axis=-1), v)
        out_vis = ref_attn(q_ir, k_vis, v_vis)
        out_ir = ref_attn(q_vis, k_ir, v_ir)

    def merge(x):
        return x.transpose(0, 2, 1, 3).reshape(b_s, nq, num_heads * d_k)

    # TODO(synk): attn_drop / resid_drop are eval-mode identities and are omitted.
    out_vis = linear(merge(out_vis), p['w_o_vis'], p['b_o_vis'])
    out_ir = linear(merge(out_ir), p['w_o_ir'], p['b_o_ir'])
    return out_vis, out_ir


def cross_transformer_block(p, rgb, ir, num_heads, use_pallas, loops=1):
    c = p['coef']
    for _ in range(loops):
        rgb_out, ir_out = cross_attention(p['att'], rgb, ir, num_heads, use_pallas)
        rgb_att = c[0] * rgb + c[1] * rgb_out
        ir_att = c[2] * ir + c[3] * ir_out
        rgb = c[4] * rgb_att + c[5] * mlp(
            p['mlp_vis'], layer_norm(rgb_att, p['ln1_g'], p['ln1_b']))
        ir = c[6] * ir_att + c[7] * mlp(
            p['mlp_ir'], layer_norm(ir_att, p['ln2_g'], p['ln2_b']))
    return rgb, ir


def transformer_fusion_block_v2(params, rgb_fea, ir_fea, *, vert_anchors,
                                horz_anchors, num_heads, use_pallas=True):
    bs, c, in_h, in_w = rgb_fea.shape

    def pool_combine(x, w1, w2):
        a = adaptive_pool2d(x, vert_anchors, horz_anchors, 'avg')
        m = adaptive_pool2d(x, vert_anchors, horz_anchors, 'max')
        if use_pallas:
            return learnable_weights(a, m, w1, w2)
        return a * jnp.asarray(w1, a.dtype) + m * jnp.asarray(w2, a.dtype)

    new_rgb = pool_combine(rgb_fea, params['vis_w1'], params['vis_w2'])
    new_ir = pool_combine(ir_fea, params['ir_w1'], params['ir_w2'])
    new_c, new_h, new_w = new_rgb.shape[1:]

    rgb_flat = new_rgb.reshape(bs, new_c, -1).transpose(0, 2, 1) + params['pos_emb_vis']
    ir_flat = new_ir.reshape(bs, new_c, -1).transpose(0, 2, 1) + params['pos_emb_ir']

    rgb_flat, ir_flat = cross_transformer_block(
        params['block'], rgb_flat, ir_flat, num_heads, use_pallas)

    def restore(flat, residual):
        x = flat.reshape(bs, new_h, new_w, new_c).transpose(0, 3, 1, 2)
        x = jax.image.resize(x, (bs, new_c, in_h, in_w), method='bilinear')
        return x + residual

    return restore(rgb_flat, rgb_fea), restore(ir_flat, ir_fea)


def init_params(key, d_model, block_exp, vert_anchors, horz_anchors,
                dtype=jnp.float32):
    d_ff = block_exp * d_model
    n_tok = vert_anchors * horz_anchors
    keys = jax.random.split(key, 12)

    def lin(k, fan_in, fan_out, std):
        return (std * jax.random.normal(k, (fan_in, fan_out), dtype),
                jnp.zeros((fan_out,), dtype))

    att = {}
    for i, nm in enumerate(['q_vis', 'k_vis', 'v_vis', 'q_ir', 'k_ir', 'v_ir',
                            'o_vis', 'o_ir']):
        w, b = lin(keys[i], d_model, d_model, 0.001)
        att['w_' + nm] = w
        att['b_' + nm] = b
    att['ln1_g'] = jnp.ones((d_model,), dtype)
    att['ln1_b'] = jnp.zeros((d_model,), dtype)
    att['ln2_g'] = jnp.ones((d_model,), dtype)
    att['ln2_b'] = jnp.zeros((d_model,), dtype)

    def make_mlp(k1, k2):
        w1, b1 = lin(k1, d_model, d_ff, 0.02)
        w2, b2 = lin(k2, d_ff, d_model, 0.02)
        return {'w1': w1, 'b1': b1, 'w2': w2, 'b2': b2}

    block = {
        'att': att,
        'mlp_vis': make_mlp(keys[8], keys[9]),
        'mlp_ir': make_mlp(keys[10], keys[11]),
        'ln1_g': jnp.ones((d_model,), dtype),
        'ln1_b': jnp.zeros((d_model,), dtype),
        'ln2_g': jnp.ones((d_model,), dtype),
        'ln2_b': jnp.zeros((d_model,), dtype),
        'coef': jnp.ones((8,), dtype),            # LearnableCoefficient x8 (init 1.0)
    }

    return {
        'block': block,
        'pos_emb_vis': jnp.zeros((1, n_tok, d_model), dtype),
        'pos_emb_ir': jnp.zeros((1, n_tok, d_model), dtype),
        'vis_w1': jnp.asarray(0.5, dtype), 'vis_w2': jnp.asarray(0.5, dtype),
        'ir_w1': jnp.asarray(0.5, dtype), 'ir_w2': jnp.asarray(0.5, dtype),
    }


if __name__ == "__main__":
    root = jax.random.PRNGKey(0)
    k_lw1, k_lw2, k_q, k_k, k_v, k_p, k_rgb, k_ir = jax.random.split(root, 8)

    # 1) LearnableWeights Pallas kernel at a size that exercises the tiled path
    #    (16 MiB per input -> 1 MiB (2048 x 128) blocks, 16 grid steps).
    xa = jax.random.normal(k_lw1, (4, 64, 128, 128), jnp.float32)
    xb = jax.random.normal(k_lw2, (4, 64, 128, 128), jnp.float32)
    w1 = jnp.asarray(0.5, jnp.float32)
    w2 = jnp.asarray(0.5, jnp.float32)
    lw_out = jax.block_until_ready(learnable_weights(xa, xb, w1, w2))
    lw_ref = xa * w1 + xb * w2
    assert lw_out.shape == lw_ref.shape and lw_out.dtype == lw_ref.dtype
    assert jnp.allclose(lw_out, lw_ref, atol=1e-6, rtol=1e-6)

    # 2) Fused attention Pallas kernel vs. XLA reference.
    q = jax.random.normal(k_q, (2, 8, 64, 16), jnp.float32)
    kk = jax.random.normal(k_k, (2, 8, 64, 16), jnp.float32)
    v = jax.random.normal(k_v, (2, 8, 64, 16), jnp.float32)
    scale = 1.0 / math.sqrt(16)
    att_out = jax.block_until_ready(attention_core(q, kk, v, scale=scale))
    s = jnp.einsum('bhqd,bhkd->bhqk', q, kk) * scale
    att_ref = jnp.einsum('bhqk,bhkd->bhqd', jax.nn.softmax(s, axis=-1), v)
    assert jnp.allclose(att_out, att_ref, atol=2e-2, rtol=2e-2)

    # 3) Full TransformerFusionBlockV2 forward at small shapes:
    #    batch=2, d_model=128, spatial 16x16, 8x8 anchors, 8 heads.
    d_model, num_heads, block_exp = 128, 8, 4
    vert = horz = 8
    bs, in_h, in_w = 2, 16, 16
    params = init_params(k_p, d_model, block_exp, vert, horz)
    rgb_fea = jax.random.normal(k_rgb, (bs, d_model, in_h, in_w), jnp.float32)
    ir_fea = jax.random.normal(k_ir, (bs, d_model, in_h, in_w), jnp.float32)

    fwd = jax.jit(functools.partial(
        transformer_fusion_block_v2, vert_anchors=vert, horz_anchors=horz,
        num_heads=num_heads, use_pallas=True))
    new_rgb, new_ir = fwd(params, rgb_fea, ir_fea)
    new_rgb = jax.block_until_ready(new_rgb)
    new_ir = jax.block_until_ready(new_ir)

    ref_rgb, ref_ir = transformer_fusion_block_v2(
        params, rgb_fea, ir_fea, vert_anchors=vert, horz_anchors=horz,
        num_heads=num_heads, use_pallas=False)

    assert new_rgb.shape == rgb_fea.shape and new_ir.shape == ir_fea.shape
    assert bool(jnp.all(jnp.isfinite(new_rgb))) and bool(jnp.all(jnp.isfinite(new_ir)))
    assert jnp.allclose(new_rgb, ref_rgb, atol=2e-2, rtol=2e-2)
    assert jnp.allclose(new_ir, ref_ir, atol=2e-2, rtol=2e-2)

    print("KERNEL_OK")
</pallas_src>

<mosaic_0001>
module attributes {stable_mosaic.version = 11 : i64} {
  func.func @_learnable_weights_kernel(%arg0: i32, %arg1: memref<1x1xf32, #tpu.memory_space<smem>>, %arg2: memref<1x1xf32, #tpu.memory_space<smem>>, %arg3: memref<2048x128xf32, #tpu.memory_space<vmem>>, %arg4: memref<2048x128xf32, #tpu.memory_space<vmem>>, %arg5: memref<2048x128xf32, #tpu.memory_space<vmem>>) attributes {dimension_semantics = [#tpu.dimension_semantics<parallel>], iteration_bounds = array<i64: 16>, scalar_prefetch = 0 : i64, scratch_operands = 0 : i64, tpu.core_type = #tpu.core_type<tc>, window_params = [{transform_indices = @transform_0, window_bounds = array<i64: 1, 1>}, {transform_indices = @transform_1, window_bounds = array<i64: 1, 1>}, {transform_indices = @transform_2, window_bounds = array<i64: 2048, 128>}, {transform_indices = @transform_3, window_bounds = array<i64: 2048, 128>}, {transform_indices = @transform_4, window_bounds = array<i64: 2048, 128>}]} {
    %c0 = arith.constant 0 : index
    %c0_0 = arith.constant 0 : index
    %0 = memref.load %arg1[%c0, %c0_0] : memref<1x1xf32, #tpu.memory_space<smem>>
    %c0_1 = arith.constant 0 : index
    %c0_2 = arith.constant 0 : index
    %1 = memref.load %arg2[%c0_1, %c0_2] : memref<1x1xf32, #tpu.memory_space<smem>>
    %c0_3 = arith.constant 0 : index
    %c0_4 = arith.constant 0 : index
    %2 = vector.load %arg3[%c0_3, %c0_4] : memref<2048x128xf32, #tpu.memory_space<vmem>>, vector<2048x128xf32>
    %3 = vector.broadcast %0 : f32 to vector<2048x128xf32>
    %4 = arith.mulf %2, %3 : vector<2048x128xf32>
    %c0_5 = arith.constant 0 : index
    %c0_6 = arith.constant 0 : index
    %5 = vector.load %arg4[%c0_5, %c0_6] : memref<2048x128xf32, #tpu.memory_space<vmem>>, vector<2048x128xf32>
    %6 = vector.broadcast %1 : f32 to vector<2048x128xf32>
    %7 = arith.mulf %5, %6 : vector<2048x128xf32>
    %8 = arith.addf %4, %7 : vector<2048x128xf32>
    %c0_7 = arith.constant 0 : index
    %c0_8 = arith.constant 0 : index
    %9 = vector.load %arg5[%c0_7, %c0_8] : memref<2048x128xf32, #tpu.memory_space<vmem>>, vector<2048x128xf32>
    tpu.vector_store %arg5[%c0_7, %c0_8], %8 {strides = array<i32>} : memref<2048x128xf32, #tpu.memory_space<vmem>>, vector<2048x128xf32>,
    return
  }
  func.func @transform_0(%arg0: i32) -> (i32, i32) {
    %c0_i32 = arith.constant 0 : i32
    %c0_i32_0 = arith.constant 0 : i32
    %c0_i32_1 = arith.constant 0 : i32
    return %c0_i32, %c0_i32_0 : i32, i32
  }
  func.func @transform_1(%arg0: i32) -> (i32, i32) {
    %c0_i32 = arith.constant 0 : i32
    %c0_i32_0 = arith.constant 0 : i32
    %c0_i32_1 = arith.constant 0 : i32
    return %c0_i32, %c0_i32_0 : i32, i32
  }
  func.func @transform_2(%arg0: i32) -> (i32, i32) {
    %c0_i32 = arith.constant 0 : i32
    %c0_i32_0 = arith.constant 0 : i32
    return %arg0, %c0_i32 : i32, i32
  }
  func.func @transform_3(%arg0: i32) -> (i32, i32) {
    %c0_i32 = arith.constant 0 : i32
    %c0_i32_0 = arith.constant 0 : i32
    return %arg0, %c0_i32 : i32, i32
  }
  func.func @transform_4(%arg0: i32) -> (i32, i32) {
    %c0_i32 = arith.constant 0 : i32
    %c0_i32_0 = arith.constant 0 : i32
    return %arg0, %c0_i32 : i32, i32
  }
}

</mosaic_0001>

<llo_original>
// kernel: tpu_custom_call.1
$region0: #{tpu_custom_call.1}
  #allocation0 [shape = 'u32[]', space=smem, size = 0x4, offset = 0x4, fixed_abs, tag = 'smem constant byte address 0x4 - core index']
  #allocation1 [shape = 'u32[72,128]{1,0:T(1,128)}', space=vmem, size = 0x9000, scoped, tag = 'internal scratch']
  #allocation2 [shape = 'f32[1,1]{1,0:T(1,128)S(6)}', space=smem, size = 0x200, scoped, tag = 'scoped memory for tpu_custom_call.1']
  #allocation3 [shape = 'f32[1,1]{1,0:T(1,128)S(6)}', space=smem, size = 0x200, scoped, tag = 'scoped memory for tpu_custom_call.1']
  %s0 = inlined_call_operand.<no memory space> [shape: f32[1,1], index: 0, kind: input, shape index: {}]
  %s1 = inlined_call_operand.<no memory space> [shape: f32[1,1], index: 1, kind: input, shape index: {}]
  %s2 = inlined_call_operand.hbm [shape: f32[32768,128], index: 2, kind: input, shape index: {}]
  %s3 = inlined_call_operand.hbm [shape: f32[32768,128], index: 3, kind: input, shape index: {}]
  %s4 = inlined_call_operand.hbm [shape: f32[32768,128], index: 4, kind: output, shape index: {}]
  %s5 = sld [smem:[#allocation0]]
  $region57: #{tpu_custom_call.1} parent=0
    _
  %s7 = ssub.s32 1, %s5
  %s8 = scalar_select 0, %s7, %s5
  %9 = sst [smem:[#allocation2]] %s0
  %10 = sst [smem:[#allocation3]] %s1
  $region1: #{tpu_custom_call.1} parent=0
    #allocation4 [shape = 'u8[2097152]{0}', space=vmem, size = 0x200000, scoped, tag = 'input window, operand 2']
    #allocation5 [shape = 's32[2]{0}', space=sflag, size = 0x8, scoped, tag = 'scoped memory for tpu_custom_call.1']
    #allocation6 [shape = 's32[2]{0}', space=sflag, size = 0x8, scoped, tag = 'scoped memory for tpu_custom_call.1']
    #allocation7 [shape = 'u8[2097152]{0}', space=vmem, size = 0x200000, scoped, tag = 'input window, operand 3']
    #allocation8 [shape = 's32[2]{0}', space=sflag, size = 0x8, scoped, tag = 'scoped memory for tpu_custom_call.1']
    #allocation9 [shape = 'u8[2097152]{0}', space=vmem, size = 0x200000, scoped, tag = 'output window, operand 0']
    %11 = vsyncpa [#allocation5], 0
    %s12 = scalar_lea.sflag [#allocation5], 1
    %13 = vsyncpa %s12, 0
    %14 = vsyncpa [#allocation8], 0
    %s15 = scalar_lea.sflag [#allocation8], 1
    %16 = vsyncpa %s15, 0
    %17 = vsyncpa [#allocation6], 0
    %s18 = scalar_lea.sflag [#allocation6], 1
    %19 = vsyncpa %s18, 0
    loop: start=0, step=1, limit=18
    $region2: #{tpu_custom_call.1} parent=1 // loop_pre_header
      _
    $region3: #{tpu_custom_call.1} parent=1 // loop_header
      %s21 = sphi 0, %s25
      %p22 = scmp.ge.s32.totalorder %s21, 18
      %s29 = sphi 0, %s29
      %s31 = sphi 0, %s29
      %s32 = sphi 0, %s31
      %s46 = sphi 0, %s32
      %s50 = sphi 0, %s50
      %s52 = sphi 0, %s50
      %s53 = sphi 0, %s52
      %s67 = sphi 0, %s53
      %s73 = sphi 0, %s75
      %s76 = sphi 0, %s73
      %s77 = sphi 0, %s76
      %s93 = sphi 0, %s77
      %s99 = sphi 0, %s101
      %s102 = sphi 0, %s99
      %s103 = sphi 0, %s102
      %s119 = sphi 0, %s103
      %s125 = sphi 0, %s127
      %s128 = sphi 0, %s125
      %s129 = sphi 0, %s128
      %s145 = sphi 0, %s129
    $region4: #{tpu_custom_call.1} parent=1 // loop_header_branch
      %24 = sbr.rel (%p22) target = $region8
    $region5: #{tpu_custom_call.1} parent=1 // loop_body
      %s26 = ssub.s32 %s21, 1
      %s27 = ssub.s32 %s21, 2
      %s28 = sadd.s32 %s21, 1
      %s30 = sadd.s32 %s29, 1
      %p33 = scmp.eq.s32.totalorder %s21, 15
      %p34 = scmp.ne.s32.totalorder %s29, %s31
      %p35 = scmp.eq.s32.totalorder %s21, 0
      %p36 = por %p34, %p35
      %p37 = scmp.ne.s32.totalorder %s29, %s31
      %p38 = scmp.eq.s32.totalorder %s26, 15
      %p39 = por %p37, %p38
      %p40 = scmp.ne.s32.totalorder %s31, %s32
      %p41 = scmp.eq.s32.totalorder %s26, 0
      %p42 = por %p40, %p41
      %p43 = scmp.ne.s32.totalorder %s31, %s32
      %p44 = scmp.eq.s32.totalorder %s27, 15
      %p45 = por %p43, %p44
      %p47 = scmp.ne.s32.totalorder %s32, %s46
      %p48 = scmp.eq.s32.totalorder %s27, 0
      %p49 = por %p47, %p48
      %s51 = sadd.s32 %s50, 1
      %p54 = scmp.eq.s32.totalorder %s21, 15
      %p55 = scmp.ne.s32.totalorder %s50, %s52
      %p56 = scmp.eq.s32.totalorder %s21, 0
      %p57 = por %p55, %p56
      %p58 = scmp.ne.s32.totalorder %s50, %s52
      %p59 = scmp.eq.s32.totalorder %s26, 15
      %p60 = por %p58, %p59
      %p61 = scmp.ne.s32.totalorder %s52, %s53
      %p62 = scmp.eq.s32.totalorder %s26, 0
      %p63 = por %p61, %p62
      %p64 = scmp.ne.s32.totalorder %s52, %s53
      %p65 = scmp.eq.s32.totalorder %s27, 15
      %p66 = por %p64, %p65
      %p68 = scmp.ne.s32.totalorder %s53, %s67
      %p69 = scmp.eq.s32.totalorder %s27, 0
      %p70 = por %p68, %p69
      %s71 = ssub.s32 %s21, %s28
      %p72 = scmp.eq.s32.totalorder %s71, 0
      %s74 = sadd.s32 %s73, 1
      %s75 = scalar_select %p72, %s73, %s74
      %p78 = pneg %p72
      %p79 = scmp.eq.s32.totalorder %s21, 15
      %p80 = por %p78, %p79
      %p81 = scmp.ne.s32.totalorder %s73, %s76
      %p82 = scmp.eq.s32.totalorder %s21, 0
      %p83 = por %p81, %p82
      %p84 = scmp.ne.s32.totalorder %s73, %s76
      %p85 = scmp.eq.s32.totalorder %s26, 15
      %p86 = por %p84, %p85
      %p87 = scmp.ne.s32.totalorder %s76, %s77
      %p88 = scmp.eq.s32.totalorder %s26, 0
      %p89 = por %p87, %p88
      %p90 = scmp.ne.s32.totalorder %s76, %s77
      %p91 = scmp.eq.s32.totalorder %s27, 15
      %p92 = por %p90, %p91
      %p94 = scmp.ne.s32.totalorder %s77, %s93
      %p95 = scmp.eq.s32.totalorder %s27, 0
      %p96 = por %p94, %p95
      %s97 = ssub.s32 %s21, %s28
      %p98 = scmp.eq.s32.totalorder %s97, 0
      %s100 = sadd.s32 %s99, 1
      %s101 = scalar_select %p98, %s99, %s100
      %p104 = pneg %p98
      %p105 = scmp.eq.s32.totalorder %s21, 15
      %p106 = por %p104, %p105
      %p107 = scmp.ne.s32.totalorder %s99, %s102
      %p108 = scmp.eq.s32.totalorder %s21, 0
      %p109 = por %p107, %p108
      %p110 = scmp.ne.s32.totalorder %s99, %s102
      %p111 = scmp.eq.s32.totalorder %s26, 15
      %p112 = por %p110, %p111
      %p113 = scmp.ne.s32.totalorder %s102, %s103
      %p114 = scmp.eq.s32.totalorder %s26, 0
      %p115 = por %p113, %p114
      %p116 = scmp.ne.s32.totalorder %s102, %s103
      %p117 = scmp.eq.s32.totalorder %s27, 15
      %p118 = por %p116, %p117
      %p120 = scmp.ne.s32.totalorder %s103, %s119
      %p121 = scmp.eq.s32.totalorder %s27, 0
      %p122 = por %p120, %p121
      %s123 = ssub.s32 %s21, %s28
      %p124 = scmp.eq.s32.totalorder %s123, 0
      %s126 = sadd.s32 %s125, 1
      %s127 = scalar_select %p124, %s125, %s126
      %p130 = pneg %p124
      %p131 = scmp.eq.s32.totalorder %s21, 15
      %p132 = por %p130, %p131
      %p133 = scmp.ne.s32.totalorder %s125, %s128
      %p134 = scmp.eq.s32.totalorder %s21, 0
      %p135 = por %p133, %p134
      %p136 = scmp.ne.s32.totalorder %s125, %s128
      %p137 = scmp.eq.s32.totalorder %s26, 15
      %p138 = por %p136, %p137
      %p139 = scmp.ne.s32.totalorder %s128, %s129
      %p140 = scmp.eq.s32.totalorder %s26, 0
      %p141 = por %p139, %p140
      %p142 = scmp.ne.s32.totalorder %s128, %s129
      %p143 = scmp.eq.s32.totalorder %s27, 15
      %p144 = por %p142, %p143
      %p146 = scmp.ne.s32.totalorder %s129, %s145
      %p147 = scmp.eq.s32.totalorder %s27, 0
      %p148 = por %p146, %p147
      %p149 = scmp.le.s32.totalorder 1, %s21
      %p150 = scmp.lt.s32.totalorder %s21, 17
      %p151 = pnand %p149, %p150
      %p152 = pneg %p151
      // Predicated region
      $region9: #{tpu_custom_call.1} parent=5 // pred_check
        _
      $region10: #{tpu_custom_call.1} parent=5 // pred_check_branch
        %154 = sbr.rel (%p151) target = $region12
      $region11: #{tpu_custom_call.1} parent=5 // pred_region
        %s155 = ssub.s32 %s21, 1
        // Predicated region
        $region13: #{tpu_custom_call.1} parent=11 // pred_check
          %p156 = pneg %p42
        $region14: #{tpu_custom_call.1} parent=11 // pred_check_branch
          %158 = sbr.rel (%p156) target = $region16
        $region15: #{tpu_custom_call.1} parent=11 // pred_region
          _
        $region16: #{tpu_custom_call.1} parent=11 // pred_fallthru
          _
        // Predicated region
        $region17: #{tpu_custom_call.1} parent=11 // pred_check
          %p159 = pneg %p63
        $region18: #{tpu_custom_call.1} parent=11 // pred_check_branch
          %161 = sbr.rel (%p159) target = $region20
        $region19: #{tpu_custom_call.1} parent=11 // pred_region
          _
        $region20: #{tpu_custom_call.1} parent=11 // pred_fallthru
          _
      $region12: #{tpu_custom_call.1} parent=5 // pred_fallthru
        _
      %p162 = scmp.lt.s32.totalorder %s21, 16
      // Predicated region
      $region21: #{tpu_custom_call.1} parent=5 // pred_check
        %p163 = pneg %p162
      $region22: #{tpu_custom_call.1} parent=5 // pred_check_branch
        %165 = sbr.rel (%p163) target = $region24
      $region23: #{tpu_custom_call.1} parent=5 // pred_region
        // Predicated region
        $region25: #{tpu_custom_call.1} parent=23 // pred_check
          %p166 = pneg %p83
        $region26: #{tpu_custom_call.1} parent=23 // pred_check_branch
          %168 = sbr.rel (%p166) target = $region28
        $region27: #{tpu_custom_call.1} parent=23 // pred_region
          %s169 = sand.u32 %s73, 1
          %s170 = scalar_lea.sflag [#allocation5], %s169
          %s171 = sand.u32 %s73, 1
          %s172 = smul.addr %s171, 2048
          %s173 = scalar_lea.vmem [#allocation4], %s172
          %s174 = smul.u32 256, %s21
          %176 = vsyncadd %s170, 0
          %s177 = smul.addr %s174, 8
          %s178 = scalar_lea.hbm %s2, %s177
          %s179 = sshll.u32 %s178, 4
          %s180 = int_to_ptr.hbm [resolvable:$true] %s179
          %s181 = sshll.u32 %s173, 4
          %s182 = int_to_ptr.vmem [resolvable:$true] %s181
          %187 = dma.hbm_to_vmem [thread:$0]  %s180, 32768, %s182, %s170, 128, 128, 8
        $region28: #{tpu_custom_call.1} parent=23 // pred_fallthru
          _
        // Predicated region
        $region29: #{tpu_custom_call.1} parent=23 // pred_check
          %p188 = pneg %p109
        $region30: #{tpu_custom_call.1} parent=23 // pred_check_branch
          %190 = sbr.rel (%p188) target = $region32
        $region31: #{tpu_custom_call.1} parent=23 // pred_region
          %s191 = sand.u32 %s99, 1
          %s192 = scalar_lea.sflag [#allocation8], %s191
          %s193 = sand.u32 %s99, 1
          %s194 = smul.addr %s193, 2048
          %s195 = scalar_lea.vmem [#allocation7], %s194
          %s196 = smul.u32 256, %s21
          %198 = vsyncadd %s192, 0
          %s199 = smul.addr %s196, 8
          %s200 = scalar_lea.hbm %s3, %s199
          %s201 = sshll.u32 %s200, 4
          %s202 = int_to_ptr.hbm [resolvable:$true] %s201
          %s203 = sshll.u32 %s195, 4
          %s204 = int_to_ptr.vmem [resolvable:$true] %s203
          %209 = dma.hbm_to_vmem [thread:$0]  %s202, 32768, %s204, %s192, 128, 128, 8
        $region32: #{tpu_custom_call.1} parent=23 // pred_fallthru
          _
      $region24: #{tpu_custom_call.1} parent=5 // pred_fallthru
        _
      %p210 = scmp.le.s32.totalorder 1, %s21
      %p211 = scmp.lt.s32.totalorder %s21, 17
      %p212 = pnand %p210, %p211
      %p213 = pneg %p212
      // Predicated region
      $region33: #{tpu_custom_call.1} parent=5 // pred_check
        _
      $region34: #{tpu_custom_call.1} parent=5 // pred_check_branch
        %215 = sbr.rel (%p212) target = $region36
      $region35: #{tpu_custom_call.1} parent=5 // pred_region
        %s216 = ssub.s32 %s21, 1
        %s217 = sand.u32 %s76, 1
        %s218 = scalar_lea.sflag [#allocation5], %s217
        %s219 = sand.u32 %s76, 1
        %s220 = smul.addr %s219, 2048
        %s221 = scalar_lea.vmem [#allocation4], %s220
        // Predicated region
        $region37: #{tpu_custom_call.1} parent=35 // pred_check
          %p222 = pneg %p89
        $region38: #{tpu_custom_call.1} parent=35 // pred_check_branch
          %224 = sbr.rel (%p222) target = $region40
        $region39: #{tpu_custom_call.1} parent=35 // pred_region
          %226 = dma.done %s218, 32768
        $region40: #{tpu_custom_call.1} parent=35 // pred_fallthru
          _
        %s227 = sand.u32 %s102, 1
        %s228 = scalar_lea.sflag [#allocation8], %s227
        %s229 = sand.u32 %s102, 1
        %s230 = smul.addr %s229, 2048
        %s231 = scalar_lea.vmem [#allocation7], %s230
        // Predicated region
        $region41: #{tpu_custom_call.1} parent=35 // pred_check
          %p232 = pneg %p115
        $region42: #{tpu_custom_call.1} parent=35 // pred_check_branch
          %234 = sbr.rel (%p232) target = $region44
        $region43: #{tpu_custom_call.1} parent=35 // pred_region
          %236 = dma.done %s228, 32768
        $region44: #{tpu_custom_call.1} parent=35 // pred_fallthru
          _
        %p237 = pneg %p42
        %p238 = pneg %p39
        %p239 = pneg %p63
        %p240 = pneg %p60
        %s241 = sand.u32 %s76, 1
        %s242 = scalar_lea.sflag [#allocation5], %s241
        %s243 = sand.u32 %s76, 1
        %s244 = smul.addr %s243, 2048
        %s245 = scalar_lea.vmem [#allocation4], %s244
        %p246 = pneg %p89
        %p247 = pneg %p86
        %s248 = sand.u32 %s102, 1
        %s249 = scalar_lea.sflag [#allocation8], %s248
        %s250 = sand.u32 %s102, 1
        %s251 = smul.addr %s250, 2048
        %s252 = scalar_lea.vmem [#allocation7], %s251
        %p253 = pneg %p115
        %p254 = pneg %p112
        %p255 = pneg %p141
        %p256 = pneg %p138
        %s257 = sand.u32 %s128, 1
        %s258 = scalar_lea.sflag [#allocation6], %s257
        %s259 = sand.u32 %s128, 1
        %s260 = smul.addr %s259, 2048
        %s261 = scalar_lea.vmem [#allocation9], %s260
        %s262 = smul.u32 256, %s26
        %s263 = smul.u32 256, %s26
        %s264 = smul.u32 256, %s26
        %s265 = sld [smem:[#allocation2]]
        %s266 = sld [smem:[#allocation3]]
        %v267 = vld [vmem:[%s221] sm:$0xff]
        %v268 = vld [vmem:[%s221 + $0x8] sm:$0xff]
        %v269 = vld [vmem:[%s221 + $0x10] sm:$0xff]
        %v270 = vld [vmem:[%s221 + $0x18] sm:$0xff]
        %v271 = vld [vmem:[%s221 + $0x20] sm:$0xff]
        %v272 = vld [vmem:[%s221 + $0x28] sm:$0xff]
        %v273 = vld [vmem:[%s221 + $0x30] sm:$0xff]
        %v274 = vld [vmem:[%s221 + $0x38] sm:$0xff]
        %v275 = vld [vmem:[%s221 + $0x40] sm:$0xff]
        %v276 = vld [vmem:[%s221 + $0x48] sm:$0xff]
        %v277 = vld [vmem:[%s221 + $0x50] sm:$0xff]
        %v278 = vld [vmem:[%s221 + $0x58] sm:$0xff]
        %v279 = vld [vmem:[%s221 + $0x60] sm:$0xff]
        %v280 = vld [vmem:[%s221 + $0x68] sm:$0xff]
        %v281 = vld [vmem:[%s221 + $0x70] sm:$0xff]
        %v282 = vld [vmem:[%s221 + $0x78] sm:$0xff]
        %v283 = vld [vmem:[%s221 + $0x80] sm:$0xff]
        %v284 = vld [vmem:[%s221 + $0x88] sm:$0xff]
        %v285 = vld [vmem:[%s221 + $0x90] sm:$0xff]
        %v286 = vld [vmem:[%s221 + $0x98] sm:$0xff]
        %v287 = vld [vmem:[%s221 + $0xa0] sm:$0xff]
        %v288 = vld [vmem:[%s221 + $0xa8] sm:$0xff]
        %v289 = vld [vmem:[%s221 + $0xb0] sm:$0xff]
        %v290 = vld [vmem:[%s221 + $0xb8] sm:$0xff]
        %v291 = vld [vmem:[%s221 + $0xc0] sm:$0xff]
        %v292 = vld [vmem:[%s221 + $0xc8] sm:$0xff]
        %v293 = vld [vmem:[%s221 + $0xd0] sm:$0xff]
        %v294 = vld [vmem:[%s221 + $0xd8] sm:$0xff]
        %v295 = vld [vmem:[%s221 + $0xe0] sm:$0xff]
        %v296 = vld [vmem:[%s221 + $0xe8] sm:$0xff]
        %v297 = vld [vmem:[%s221 + $0xf0] sm:$0xff]
        %v298 = vld [vmem:[%s221 + $0xf8] sm:$0xff]
        %v299 = vld [vmem:[%s221 + $0x100] sm:$0xff]
        %v300 = vld [vmem:[%s221 + $0x108] sm:$0xff]
        %v301 = vld [vmem:[%s221 + $0x110] sm:$0xff]
        %v302 = vld [vmem:[%s221 + $0x118] sm:$0xff]
        %v303 = vld [vmem:[%s221 + $0x120] sm:$0xff]
        %v304 = vld [vmem:[%s221 + $0x128] sm:$0xff]
        %v305 = vld [vmem:[%s221 + $0x130] sm:$0xff]
        %v306 = vld [vmem:[%s221 + $0x138] sm:$0xff]
        %v307 = vld [vmem:[%s221 + $0x140] sm:$0xff]
        %v308 = vld [vmem:[%s221 + $0x148] sm:$0xff]
        %v309 = vld [vmem:[%s221 + $0x150] sm:$0xff]
        %v310 = vld [vmem:[%s221 + $0x158] sm:$0xff]
        %v311 = vld [vmem:[%s221 + $0x160] sm:$0xff]
        %v312 = vld [vmem:[%s221 + $0x168] sm:$0xff]
        %v313 = vld [vmem:[%s221 + $0x170] sm:$0xff]
        %v314 = vld [vmem:[%s221 + $0x178] sm:$0xff]
        %v315 = vld [vmem:[%s221 + $0x180] sm:$0xff]
        %v316 = vld [vmem:[%s221 + $0x188] sm:$0xff]
        %v317 = vld [vmem:[%s221 + $0x190] sm:$0xff]
        %v318 = vld [vmem:[%s221 + $0x198] sm:$0xff]
        %v319 = vld [vmem:[%s221 + $0x1a0] sm:$0xff]
        %v320 = vld [vmem:[%s221 + $0x1a8] sm:$0xff]
        %v321 = vld [vmem:[%s221 + $0x1b0] sm:$0xff]
        %v322 = vld [vmem:[%s221 + $0x1b8] sm:$0xff]
        %v323 = vld [vmem:[%s221 + $0x1c0] sm:$0xff]
        %v324 = vld [vmem:[%s221 + $0x1c8] sm:$0xff]
        %v325 = vld [vmem:[%s221 + $0x1d0] sm:$0xff]
        %v326 = vld [vmem:[%s221 + $0x1d8] sm:$0xff]
        %v327 = vld [vmem:[%s221 + $0x1e0] sm:$0xff]
        %v328 = vld [vmem:[%s221 + $0x1e8] sm:$0xff]
        %v329 = vld [vmem:[%s221 + $0x1f0] sm:$0xff]
        %v330 = vld [vmem:[%s221 + $0x1f8] sm:$0xff]
        %v331 = vld [vmem:[%s221 + $0x200] sm:$0xff]
        %v332 = vld [vmem:[%s221 + $0x208] sm:$0xff]
        %v333 = vld [vmem:[%s221 + $0x210] sm:$0xff]
        %v334 = vld [vmem:[%s221 + $0x218] sm:$0xff]
        %v335 = vld [vmem:[%s221 + $0x220] sm:$0xff]
        %v336 = vld [vmem:[%s221 + $0x228] sm:$0xff]
        %v337 = vld [vmem:[%s221 + $0x230] sm:$0xff]
        %v338 = vld [vmem:[%s221 + $0x238] sm:$0xff]
        %v339 = vld [vmem:[%s221 + $0x240] sm:$0xff]
        %v340 = vld [vmem:[%s221 + $0x248] sm:$0xff]
        %v341 = vld [vmem:[%s221 + $0x250] sm:$0xff]
        %v342 = vld [vmem:[%s221 + $0x258] sm:$0xff]
        %v343 = vld [vmem:[%s221 + $0x260] sm:$0xff]
        %v344 = vld [vmem:[%s221 + $0x268] sm:$0xff]
        %v345 = vld [vmem:[%s221 + $0x270] sm:$0xff]
        %v346 = vld [vmem:[%s221 + $0x278] sm:$0xff]
        %v347 = vld [vmem:[%s221 + $0x280] sm:$0xff]
        %v348 = vld [vmem:[%s221 + $0x288] sm:$0xff]
        %v349 = vld [vmem:[%s221 + $0x290] sm:$0xff]
        %v350 = vld [vmem:[%s221 + $0x298] sm:$0xff]
        %v351 = vld [vmem:[%s221 + $0x2a0] sm:$0xff]
        %v352 = vld [vmem:[%s221 + $0x2a8] sm:$0xff]
        %v353 = vld [vmem:[%s221 + $0x2b0] sm:$0xff]
        %v354 = vld [vmem:[%s221 + $0x2b8] sm:$0xff]
        %v355 = vld [vmem:[%s221 + $0x2c0] sm:$0xff]
        %v356 = vld [vmem:[%s221 + $0x2c8] sm:$0xff]
        %v357 = vld [vmem:[%s221 + $0x2d0] sm:$0xff]
        %v358 = vld [vmem:[%s221 + $0x2d8] sm:$0xff]
        %v359 = vld [vmem:[%s221 + $0x2e0] sm:$0xff]
        %v360 = vld [vmem:[%s221 + $0x2e8] sm:$0xff]
        %v361 = vld [vmem:[%s221 + $0x2f0] sm:$0xff]
        %v362 = vld [vmem:[%s221 + $0x2f8] sm:$0xff]
        %v363 = vld [vmem:[%s221 + $0x300] sm:$0xff]
        %v364 = vld [vmem:[%s221 + $0x308] sm:$0xff]
        %v365 = vld [vmem:[%s221 + $0x310] sm:$0xff]
        %v366 = vld [vmem:[%s221 + $0x318] sm:$0xff]
        %v367 = vld [vmem:[%s221 + $0x320] sm:$0xff]
        %v368 = vld [vmem:[%s221 + $0x328] sm:$0xff]
        %v369 = vld [vmem:[%s221 + $0x330] sm:$0xff]
        %v370 = vld [vmem:[%s221 + $0x338] sm:$0xff]
        %v371 = vld [vmem:[%s221 + $0x340] sm:$0xff]
        %v372 = vld [vmem:[%s221 + $0x348] sm:$0xff]
        %v373 = vld [vmem:[%s221 + $0x350] sm:$0xff]
        %v374 = vld [vmem:[%s221 + $0x358] sm:$0xff]
        %v375 = vld [vmem:[%s221 + $0x360] sm:$0xff]
        %v376 = vld [vmem:[%s221 + $0x368] sm:$0xff]
        %v377 = vld [vmem:[%s221 + $0x370] sm:$0xff]
        %v378 = vld [vmem:[%s221 + $0x378] sm:$0xff]
        %v379 = vld [vmem:[%s221 + $0x380] sm:$0xff]
        %v380 = vld [vmem:[%s221 + $0x388] sm:$0xff]
        %v381 = vld [vmem:[%s221 + $0x390] sm:$0xff]
        %v382 = vld [vmem:[%s221 + $0x398] sm:$0xff]
        %v383 = vld [vmem:[%s221 + $0x3a0] sm:$0xff]
        %v384 = vld [vmem:[%s221 + $0x3a8] sm:$0xff]
        %v385 = vld [vmem:[%s221 + $0x3b0] sm:$0xff]
        %v386 = vld [vmem:[%s221 + $0x3b8] sm:$0xff]
        %v387 = vld [vmem:[%s221 + $0x3c0] sm:$0xff]
        %v388 = vld [vmem:[%s221 + $0x3c8] sm:$0xff]
        %v389 = vld [vmem:[%s221 + $0x3d0] sm:$0xff]
        %v390 = vld [vmem:[%s221 + $0x3d8] sm:$0xff]
        %v391 = vld [vmem:[%s221 + $0x3e0] sm:$0xff]
        %v392 = vld [vmem:[%s221 + $0x3e8] sm:$0xff]
        %v393 = vld [vmem:[%s221 + $0x3f0] sm:$0xff]
        %v394 = vld [vmem:[%s221 + $0x3f8] sm:$0xff]
        %v395 = vld [vmem:[%s221 + $0x400] sm:$0xff]
        %v396 = vld [vmem:[%s221 + $0x408] sm:$0xff]
        %v397 = vld [vmem:[%s221 + $0x410] sm:$0xff]
        %v398 = vld [vmem:[%s221 + $0x418] sm:$0xff]
        %v399 = vld [vmem:[%s221 + $0x420] sm:$0xff]
        %v400 = vld [vmem:[%s221 + $0x428] sm:$0xff]
        %v401 = vld [vmem:[%s221 + $0x430] sm:$0xff]
        %v402 = vld [vmem:[%s221 + $0x438] sm:$0xff]
        %v403 = vld [vmem:[%s221 + $0x440] sm:$0xff]
        %v404 = vld [vmem:[%s221 + $0x448] sm:$0xff]
        %v405 = vld [vmem:[%s221 + $0x450] sm:$0xff]
        %v406 = vld [vmem:[%s221 + $0x458] sm:$0xff]
        %v407 = vld [vmem:[%s221 + $0x460] sm:$0xff]
        %v408 = vld [vmem:[%s221 + $0x468] sm:$0xff]
        %v409 = vld [vmem:[%s221 + $0x470] sm:$0xff]
        %v410 = vld [vmem:[%s221 + $0x478] sm:$0xff]
        %v411 = vld [vmem:[%s221 + $0x480] sm:$0xff]
        %v412 = vld [vmem:[%s221 + $0x488] sm:$0xff]
        %v413 = vld [vmem:[%s221 + $0x490] sm:$0xff]
        %v414 = vld [vmem:[%s221 + $0x498] sm:$0xff]
        %v415 = vld [vmem:[%s221 + $0x4a0] sm:$0xff]
        %v416 = vld [vmem:[%s221 + $0x4a8] sm:$0xff]
        %v417 = vld [vmem:[%s221 + $0x4b0] sm:$0xff]
        %v418 = vld [vmem:[%s221 + $0x4b8] sm:$0xff]
        %v419 = vld [vmem:[%s221 + $0x4c0] sm:$0xff]
        %v420 = vld [vmem:[%s221 + $0x4c8] sm:$0xff]
        %v421 = vld [vmem:[%s221 + $0x4d0] sm:$0xff]
        %v422 = vld [vmem:[%s221 + $0x4d8] sm:$0xff]
        %v423 = vld [vmem:[%s221 + $0x4e0] sm:$0xff]
        %v424 = vld [vmem:[%s221 + $0x4e8] sm:$0xff]
        %v425 = vld [vmem:[%s221 + $0x4f0] sm:$0xff]
        %v426 = vld [vmem:[%s221 + $0x4f8] sm:$0xff]
        %v427 = vld [vmem:[%s221 + $0x500] sm:$0xff]
        %v428 = vld [vmem:[%s221 + $0x508] sm:$0xff]
        %v429 = vld [vmem:[%s221 + $0x510] sm:$0xff]
        %v430 = vld [vmem:[%s221 + $0x518] sm:$0xff]
        %v431 = vld [vmem:[%s221 + $0x520] sm:$0xff]
        %v432 = vld [vmem:[%s221 + $0x528] sm:$0xff]
        %v433 = vld [vmem:[%s221 + $0x530] sm:$0xff]
        %v434 = vld [vmem:[%s221 + $0x538] sm:$0xff]
        %v435 = vld [vmem:[%s221 + $0x540] sm:$0xff]
        %v436 = vld [vmem:[%s221 + $0x548] sm:$0xff]
        %v437 = vld [vmem:[%s221 + $0x550] sm:$0xff]
        %v438 = vld [vmem:[%s221 + $0x558] sm:$0xff]
        %v439 = vld [vmem:[%s221 + $0x560] sm:$0xff]
        %v440 = vld [vmem:[%s221 + $0x568] sm:$0xff]
        %v441 = vld [vmem:[%s221 + $0x570] sm:$0xff]
        %v442 = vld [vmem:[%s221 + $0x578] sm:$0xff]
        %v443 = vld [vmem:[%s221 + $0x580] sm:$0xff]
        %v444 = vld [vmem:[%s221 + $0x588] sm:$0xff]
        %v445 = vld [vmem:[%s221 + $0x590] sm:$0xff]
        %v446 = vld [vmem:[%s221 + $0x598] sm:$0xff]
        %v447 = vld [vmem:[%s221 + $0x5a0] sm:$0xff]
        %v448 = vld [vmem:[%s221 + $0x5a8] sm:$0xff]
        %v449 = vld [vmem:[%s221 + $0x5b0] sm:$0xff]
        %v450 = vld [vmem:[%s221 + $0x5b8] sm:$0xff]
        %v451 = vld [vmem:[%s221 + $0x5c0] sm:$0xff]
        %v452 = vld [vmem:[%s221 + $0x5c8] sm:$0xff]
        %v453 = vld [vmem:[%s221 + $0x5d0] sm:$0xff]
        %v454 = vld [vmem:[%s221 + $0x5d8] sm:$0xff]
        %v455 = vld [vmem:[%s221 + $0x5e0] sm:$0xff]
        %v456 = vld [vmem:[%s221 + $0x5e8] sm:$0xff]
        %v457 = vld [vmem:[%s221 + $0x5f0] sm:$0xff]
        %v458 = vld [vmem:[%s221 + $0x5f8] sm:$0xff]
        %v459 = vld [vmem:[%s221 + $0x600] sm:$0xff]
        %v460 = vld [vmem:[%s221 + $0x608] sm:$0xff]
        %v461 = vld [vmem:[%s221 + $0x610] sm:$0xff]
        %v462 = vld [vmem:[%s221 + $0x618] sm:$0xff]
        %v463 = vld [vmem:[%s221 + $0x620] sm:$0xff]
        %v464 = vld [vmem:[%s221 + $0x628] sm:$0xff]
        %v465 = vld [vmem:[%s221 + $0x630] sm:$0xff]
        %v466 = vld [vmem:[%s221 + $0x638] sm:$0xff]
        %v467 = vld [vmem:[%s221 + $0x640] sm:$0xff]
        %v468 = vld [vmem:[%s221 + $0x648] sm:$0xff]
        %v469 = vld [vmem:[%s221 + $0x650] sm:$0xff]
        %v470 = vld [vmem:[%s221 + $0x658] sm:$0xff]
        %v471 = vld [vmem:[%s221 + $0x660] sm:$0xff]
        %v472 = vld [vmem:[%s221 + $0x668] sm:$0xff]
        %v473 = vld [vmem:[%s221 + $0x670] sm:$0xff]
        %v474 = vld [vmem:[%s221 + $0x678] sm:$0xff]
        %v475 = vld [vmem:[%s221 + $0x680] sm:$0xff]
        %v476 = vld [vmem:[%s221 + $0x688] sm:$0xff]
        %v477 = vld [vmem:[%s221 + $0x690] sm:$0xff]
        %v478 = vld [vmem:[%s221 + $0x698] sm:$0xff]
        %v479 = vld [vmem:[%s221 + $0x6a0] sm:$0xff]
        %v480 = vld [vmem:[%s221 + $0x6a8] sm:$0xff]
        %v481 = vld [vmem:[%s221 + $0x6b0] sm:$0xff]
        %v482 = vld [vmem:[%s221 + $0x6b8] sm:$0xff]
        %v483 = vld [vmem:[%s221 + $0x6c0] sm:$0xff]
        %v484 = vld [vmem:[%s221 + $0x6c8] sm:$0xff]
        %v485 = vld [vmem:[%s221 + $0x6d0] sm:$0xff]
        %v486 = vld [vmem:[%s221 + $0x6d8] sm:$0xff]
        %v487 = vld [vmem:[%s221 + $0x6e0] sm:$0xff]
        %v488 = vld [vmem:[%s221 + $0x6e8] sm:$0xff]
        %v489 = vld [vmem:[%s221 + $0x6f0] sm:$0xff]
        %v490 = vld [vmem:[%s221 + $0x6f8] sm:$0xff]
        %v491 = vld [vmem:[%s221 + $0x700] sm:$0xff]
        %v492 = vld [vmem:[%s221 + $0x708] sm:$0xff]
        %v493 = vld [vmem:[%s221 + $0x710] sm:$0xff]
        %v494 = vld [vmem:[%s221 + $0x718] sm:$0xff]
        %v495 = vld [vmem:[%s221 + $0x720] sm:$0xff]
        %v496 = vld [vmem:[%s221 + $0x728] sm:$0xff]
        %v497 = vld [vmem:[%s221 + $0x730] sm:$0xff]
        %v498 = vld [vmem:[%s221 + $0x738] sm:$0xff]
        %v499 = vld [vmem:[%s221 + $0x740] sm:$0xff]
        %v500 = vld [vmem:[%s221 + $0x748] sm:$0xff]
        %v501 = vld [vmem:[%s221 + $0x750] sm:$0xff]
        %v502 = vld [vmem:[%s221 + $0x758] sm:$0xff]
        %v503 = vld [vmem:[%s221 + $0x760] sm:$0xff]
        %v504 = vld [vmem:[%s221 + $0x768] sm:$0xff]
        %v505 = vld [vmem:[%s221 + $0x770] sm:$0xff]
        %v506 = vld [vmem:[%s221 + $0x778] sm:$0xff]
        %v507 = vld [vmem:[%s221 + $0x780] sm:$0xff]
        %v508 = vld [vmem:[%s221 + $0x788] sm:$0xff]
        %v509 = vld [vmem:[%s221 + $0x790] sm:$0xff]
        %v510 = vld [vmem:[%s221 + $0x798] sm:$0xff]
        %v511 = vld [vmem:[%s221 + $0x7a0] sm:$0xff]
        %v512 = vld [vmem:[%s221 + $0x7a8] sm:$0xff]
        %v513 = vld [vmem:[%s221 + $0x7b0] sm:$0xff]
        %v514 = vld [vmem:[%s221 + $0x7b8] sm:$0xff]
        %v515 = vld [vmem:[%s221 + $0x7c0] sm:$0xff]
        %v516 = vld [vmem:[%s221 + $0x7c8] sm:$0xff]
        %v517 = vld [vmem:[%s221 + $0x7d0] sm:$0xff]
        %v518 = vld [vmem:[%s221 + $0x7d8] sm:$0xff]
        %v519 = vld [vmem:[%s221 + $0x7e0] sm:$0xff]
        %v520 = vld [vmem:[%s221 + $0x7e8] sm:$0xff]
        %v521 = vld [vmem:[%s221 + $0x7f0] sm:$0xff]
        %v522 = vld [vmem:[%s221 + $0x7f8] sm:$0xff]
        %v523 = vstv %s265
        %v524 = vmul.f32 %v267, %v523
        %v525 = vmul.f32 %v268, %v523
        %v526 = vmul.f32 %v269, %v523
        %v527 = vmul.f32 %v270, %v523
        %v528 = vmul.f32 %v271, %v523
        %v529 = vmul.f32 %v272, %v523
        %v530 = vmul.f32 %v273, %v523
        %v531 = vmul.f32 %v274, %v523
        %v532 = vmul.f32 %v275, %v523
        %v533 = vmul.f32 %v276, %v523
        %v534 = vmul.f32 %v277, %v523
        %v535 = vmul.f32 %v278, %v523
        %v536 = vmul.f32 %v279, %v523
        %v537 = vmul.f32 %v280, %v523
        %v538 = vmul.f32 %v281, %v523
        %v539 = vmul.f32 %v282, %v523
        %v540 = vmul.f32 %v283, %v523
        %v541 = vmul.f32 %v284, %v523
        %v542 = vmul.f32 %v285, %v523
        %v543 = vmul.f32 %v286, %v523
        %v544 = vmul.f32 %v287, %v523
        %v545 = vmul.f32 %v288, %v523
        %v546 = vmul.f32 %v289, %v523
        %v547 = vmul.f32 %v290, %v523
        %v548 = vmul.f32 %v291, %v523
        %v549 = vmul.f32 %v292, %v523
        %v550 = vmul.f32 %v293, %v523
        %v551 = vmul.f32 %v294, %v523
        %v552 = vmul.f32 %v295, %v523
        %v553 = vmul.f32 %v296, %v523
        %v554 = vmul.f32 %v297, %v523
        %v555 = vmul.f32 %v298, %v523
        %v556 = vmul.f32 %v299, %v523
        %v557 = vmul.f32 %v300, %v523
        %v558 = vmul.f32 %v301, %v523
        %v559 = vmul.f32 %v302, %v523
        %v560 = vmul.f32 %v303, %v523
        %v561 = vmul.f32 %v304, %v523
        %v562 = vmul.f32 %v305, %v523
        %v563 = vmul.f32 %v306, %v523
        %v564 = vmul.f32 %v307, %v523
        %v565 = vmul.f32 %v308, %v523
        %v566 = vmul.f32 %v309, %v523
        %v567 = vmul.f32 %v310, %v523
        %v568 = vmul.f32 %v311, %v523
        %v569 = vmul.f32 %v312, %v523
        %v570 = vmul.f32 %v313, %v523
        %v571 = vmul.f32 %v314, %v523
        %v572 = vmul.f32 %v315, %v523
        %v573 = vmul.f32 %v316, %v523
        %v574 = vmul.f32 %v317, %v523
        %v575 = vmul.f32 %v318, %v523
        %v576 = vmul.f32 %v319, %v523
        %v577 = vmul.f32 %v320, %v523
        %v578 = vmul.f32 %v321, %v523
        %v579 = vmul.f32 %v322, %v523
        %v580 = vmul.f32 %v323, %v523
        %v581 = vmul.f32 %v324, %v523
        %v582 = vmul.f32 %v325, %v523
        %v583 = vmul.f32 %v326, %v523
        %v584 = vmul.f32 %v327, %v523
        %v585 = vmul.f32 %v328, %v523
        %v586 = vmul.f32 %v329, %v523
        %v587 = vmul.f32 %v330, %v523
        %v588 = vmul.f32 %v331, %v523
        %v589 = vmul.f32 %v332, %v523
        %v590 = vmul.f32 %v333, %v523
        %v591 = vmul.f32 %v334, %v523
        %v592 = vmul.f32 %v335, %v523
        %v593 = vmul.f32 %v336, %v523
        %v594 = vmul.f32 %v337, %v523
        %v595 = vmul.f32 %v338, %v523
        %v596 = vmul.f32 %v339, %v523
        %v597 = vmul.f32 %v340, %v523
        %v598 = vmul.f32 %v341, %v523
        %v599 = vmul.f32 %v342, %v523
        %v600 = vmul.f32 %v343, %v523
        %v601 = vmul.f32 %v344, %v523
        %v602 = vmul.f32 %v345, %v523
        %v603 = vmul.f32 %v346, %v523
        %v604 = vmul.f32 %v347, %v523
        %v605 = vmul.f32 %v348, %v523
        %v606 = vmul.f32 %v349, %v523
        %v607 = vmul.f32 %v350, %v523
        %v608 = vmul.f32 %v351, %v523
        %v609 = vmul.f32 %v352, %v523
        %v610 = vmul.f32 %v353, %v523
        %v611 = vmul.f32 %v354, %v523
        %v612 = vmul.f32 %v355, %v523
        %v613 = vmul.f32 %v356, %v523
        %v614 = vmul.f32 %v357, %v523
        %v615 = vmul.f32 %v358, %v523
        %v616 = vmul.f32 %v359, %v523
        %v617 = vmul.f32 %v360, %v523
        %v618 = vmul.f32 %v361, %v523
        %v619 = vmul.f32 %v362, %v523
        %v620 = vmul.f32 %v363, %v523
        %v621 = vmul.f32 %v364, %v523
        %v622 = vmul.f32 %v365, %v523
        %v623 = vmul.f32 %v366, %v523
        %v624 = vmul.f32 %v367, %v523
        %v625 = vmul.f32 %v368, %v523
        %v626 = vmul.f32 %v369, %v523
        %v627 = vmul.f32 %v370, %v523
        %v628 = vmul.f32 %v371, %v523
        %v629 = vmul.f32 %v372, %v523
        %v630 = vmul.f32 %v373, %v523
        %v631 = vmul.f32 %v374, %v523
        %v632 = vmul.f32 %v375, %v523
        %v633 = vmul.f32 %v376, %v523
        %v634 = vmul.f32 %v377, %v523
        %v635 = vmul.f32 %v378, %v523
        %v636 = vmul.f32 %v379, %v523
        %v637 = vmul.f32 %v380, %v523
        %v638 = vmul.f32 %v381, %v523
        %v639 = vmul.f32 %v382, %v523
        %v640 = vmul.f32 %v383, %v523
        %v641 = vmul.f32 %v384, %v523
        %v642 = vmul.f32 %v385, %v523
        %v643 = vmul.f32 %v386, %v523
        %v644 = vmul.f32 %v387, %v523
        %v645 = vmul.f32 %v388, %v523
        %v646 = vmul.f32 %v389, %v523
        %v647 = vmul.f32 %v390, %v523
        %v648 = vmul.f32 %v391, %v523
        %v649 = vmul.f32 %v392, %v523
        %v650 = vmul.f32 %v393, %v523
        %v651 = vmul.f32 %v394, %v523
        %v652 = vmul.f32 %v395, %v523
        %v653 = vmul.f32 %v396, %v523
        %v654 = vmul.f32 %v397, %v523
        %v655 = vmul.f32 %v398, %v523
        %v656 = vmul.f32 %v399, %v523
        %v657 = vmul.f32 %v400, %v523
        %v658 = vmul.f32 %v401, %v523
        %v659 = vmul.f32 %v402, %v523
        %v660 = vmul.f32 %v403, %v523
        %v661 = vmul.f32 %v404, %v523
        %v662 = vmul.f32 %v405, %v523
        %v663 = vmul.f32 %v406, %v523
        %v664 = vmul.f32 %v407, %v523
        %v665 = vmul.f32 %v408, %v523
        %v666 = vmul.f32 %v409, %v523
        %v667 = vmul.f32 %v410, %v523
        %v668 = vmul.f32 %v411, %v523
        %v669 = vmul.f32 %v412, %v523
        %v670 = vmul.f32 %v413, %v523
        %v671 = vmul.f32 %v414, %v523
        %v672 = vmul.f32 %v415, %v523
        %v673 = vmul.f32 %v416, %v523
        %v674 = vmul.f32 %v417, %v523
        %v675 = vmul.f32 %v418, %v523
        %v676 = vmul.f32 %v419, %v523
        %v677 = vmul.f32 %v420, %v523
        %v678 = vmul.f32 %v421, %v523
        %v679 = vmul.f32 %v422, %v523
        %v680 = vmul.f32 %v423, %v523
        %v681 = vmul.f32 %v424, %v523
        %v682 = vmul.f32 %v425, %v523
        %v683 = vmul.f32 %v426, %v523
        %v684 = vmul.f32 %v427, %v523
        %v685 = vmul.f32 %v428, %v523
        %v686 = vmul.f32 %v429, %v523
        %v687 = vmul.f32 %v430, %v523
        %v688 = vmul.f32 %v431, %v523
        %v689 = vmul.f32 %v432, %v523
        %v690 = vmul.f32 %v433, %v523
        %v691 = vmul.f32 %v434, %v523
        %v692 = vmul.f32 %v435, %v523
        %v693 = vmul.f32 %v436, %v523
        %v694 = vmul.f32 %v437, %v523
        %v695 = vmul.f32 %v438, %v523
        %v696 = vmul.f32 %v439, %v523
        %v697 = vmul.f32 %v440, %v523
        %v698 = vmul.f32 %v441, %v523
        %v699 = vmul.f32 %v442, %v523
        %v700 = vmul.f32 %v443, %v523
        %v701 = vmul.f32 %v444, %v523
        %v702 = vmul.f32 %v445, %v523
        %v703 = vmul.f32 %v446, %v523
        %v704 = vmul.f32 %v447, %v523
        %v705 = vmul.f32 %v448, %v523
        %v706 = vmul.f32 %v449, %v523
        %v707 = vmul.f32 %v450, %v523
        %v708 = vmul.f32 %v451, %v523
        %v709 = vmul.f32 %v452, %v523
        %v710 = vmul.f32 %v453, %v523
        %v711 = vmul.f32 %v454, %v523
        %v712 = vmul.f32 %v455, %v523
        %v713 = vmul.f32 %v456, %v523
        %v714 = vmul.f32 %v457, %v523
        %v715 = vmul.f32 %v458, %v523
        %v716 = vmul.f32 %v459, %v523
        %v717 = vmul.f32 %v460, %v523
        %v718 = vmul.f32 %v461, %v523
        %v719 = vmul.f32 %v462, %v523
        %v720 = vmul.f32 %v463, %v523
        %v721 = vmul.f32 %v464, %v523
        %v722 = vmul.f32 %v465, %v523
        %v723 = vmul.f32 %v466, %v523
        %v724 = vmul.f32 %v467, %v523
        %v725 = vmul.f32 %v468, %v523
        %v726 = vmul.f32 %v469, %v523
        %v727 = vmul.f32 %v470, %v523
        %v728 = vmul.f32 %v471, %v523
        %v729 = vmul.f32 %v472, %v523
        %v730 = vmul.f32 %v473, %v523
        %v731 = vmul.f32 %v474, %v523
        %v732 = vmul.f32 %v475, %v523
        %v733 = vmul.f32 %v476, %v523
        %v734 = vmul.f32 %v477, %v523
        %v735 = vmul.f32 %v478, %v523
        %v736 = vmul.f32 %v479, %v523
        %v737 = vmul.f32 %v480, %v523
        %v738 = vmul.f32 %v481, %v523
        %v739 = vmul.f32 %v482, %v523
        %v740 = vmul.f32 %v483, %v523
        %v741 = vmul.f32 %v484, %v523
        %v742 = vmul.f32 %v485, %v523
        %v743 = vmul.f32 %v486, %v523
        %v744 = vmul.f32 %v487, %v523
        %v745 = vmul.f32 %v488, %v523
        %v746 = vmul.f32 %v489, %v523
        %v747 = vmul.f32 %v490, %v523
        %v748 = vmul.f32 %v491, %v523
        %v749 = vmul.f32 %v492, %v523
        %v750 = vmul.f32 %v493, %v523
        %v751 = vmul.f32 %v494, %v523
        %v752 = vmul.f32 %v495, %v523
        %v753 = vmul.f32 %v496, %v523
        %v754 = vmul.f32 %v497, %v523
        %v755 = vmul.f32 %v498, %v523
        %v756 = vmul.f32 %v499, %v523
        %v757 = vmul.f32 %v500, %v523
        %v758 = vmul.f32 %v501, %v523
        %v759 = vmul.f32 %v502, %v523
        %v760 = vmul.f32 %v503, %v523
        %v761 = vmul.f32 %v504, %v523
        %v762 = vmul.f32 %v505, %v523
        %v763 = vmul.f32 %v506, %v523
        %v764 = vmul.f32 %v507, %v523
        %v765 = vmul.f32 %v508, %v523
        %v766 = vmul.f32 %v509, %v523
        %v767 = vmul.f32 %v510, %v523
        %v768 = vmul.f32 %v511, %v523
        %v769 = vmul.f32 %v512, %v523
        %v770 = vmul.f32 %v513, %v523
        %v771 = vmul.f32 %v514, %v523
        %v772 = vmul.f32 %v515, %v523
        %v773 = vmul.f32 %v516, %v523
        %v774 = vmul.f32 %v517, %v523
        %v775 = vmul.f32 %v518, %v523
        %v776 = vmul.f32 %v519, %v523
        %v777 = vmul.f32 %v520, %v523
        %v778 = vmul.f32 %v521, %v523
        %v779 = vmul.f32 %v522, %v523
        %v780 = vld [vmem:[%s231] sm:$0xff]
        %v781 = vld [vmem:[%s231 + $0x8] sm:$0xff]
        %v782 = vld [vmem:[%s231 + $0x10] sm:$0xff]
        %v783 = vld [vmem:[%s231 + $0x18] sm:$0xff]
        %v784 = vld [vmem:[%s231 + $0x20] sm:$0xff]
        %v785 = vld [vmem:[%s231 + $0x28] sm:$0xff]
        %v786 = vld [vmem:[%s231 + $0x30] sm:$0xff]
        %v787 = vld [vmem:[%s231 + $0x38] sm:$0xff]
        %v788 = vld [vmem:[%s231 + $0x40] sm:$0xff]
        %v789 = vld [vmem:[%s231 + $0x48] sm:$0xff]
        %v790 = vld [vmem:[%s231 + $0x50] sm:$0xff]
        %v791 = vld [vmem:[%s231 + $0x58] sm:$0xff]
        %v792 = vld [vmem:[%s231 + $0x60] sm:$0xff]
        %v793 = vld [vmem:[%s231 + $0x68] sm:$0xff]
        %v794 = vld [vmem:[%s231 + $0x70] sm:$0xff]
        %v795 = vld [vmem:[%s231 + $0x78] sm:$0xff]
        %v796 = vld [vmem:[%s231 + $0x80] sm:$0xff]
        %v797 = vld [vmem:[%s231 + $0x88] sm:$0xff]
        %v798 = vld [vmem:[%s231 + $0x90] sm:$0xff]
        %v799 = vld [vmem:[%s231 + $0x98] sm:$0xff]
        %v800 = vld [vmem:[%s231 + $0xa0] sm:$0xff]
        %v801 = vld [vmem:[%s231 + $0xa8] sm:$0xff]
        %v802 = vld [vmem:[%s231 + $0xb0] sm:$0xff]
        %v803 = vld [vmem:[%s231 + $0xb8] sm:$0xff]
        %v804 = vld [vmem:[%s231 + $0xc0] sm:$0xff]
        %v805 = vld [vmem:[%s231 + $0xc8] sm:$0xff]
        %v806 = vld [vmem:[%s231 + $0xd0] sm:$0xff]
        %v807 = vld [vmem:[%s231 + $0xd8] sm:$0xff]
        %v808 = vld [vmem:[%s231 + $0xe0] sm:$0xff]
        %v809 = vld [vmem:[%s231 + $0xe8] sm:$0xff]
        %v810 = vld [vmem:[%s231 + $0xf0] sm:$0xff]
        %v811 = vld [vmem:[%s231 + $0xf8] sm:$0xff]
        %v812 = vld [vmem:[%s231 + $0x100] sm:$0xff]
        %v813 = vld [vmem:[%s231 + $0x108] sm:$0xff]
        %v814 = vld [vmem:[%s231 + $0x110] sm:$0xff]
        %v815 = vld [vmem:[%s231 + $0x118] sm:$0xff]
        %v816 = vld [vmem:[%s231 + $0x120] sm:$0xff]
        %v817 = vld [vmem:[%s231 + $0x128] sm:$0xff]
        %v818 = vld [vmem:[%s231 + $0x130] sm:$0xff]
        %v819 = vld [vmem:[%s231 + $0x138] sm:$0xff]
        %v820 = vld [vmem:[%s231 + $0x140] sm:$0xff]
        %v821 = vld [vmem:[%s231 + $0x148] sm:$0xff]
        %v822 = vld [vmem:[%s231 + $0x150] sm:$0xff]
        %v823 = vld [vmem:[%s231 + $0x158] sm:$0xff]
        %v824 = vld [vmem:[%s231 + $0x160] sm:$0xff]
        %v825 = vld [vmem:[%s231 + $0x168] sm:$0xff]
        %v826 = vld [vmem:[%s231 + $0x170] sm:$0xff]
        %v827 = vld [vmem:[%s231 + $0x178] sm:$0xff]
        %v828 = vld [vmem:[%s231 + $0x180] sm:$0xff]
        %v829 = vld [vmem:[%s231 + $0x188] sm:$0xff]
        %v830 = vld [vmem:[%s231 + $0x190] sm:$0xff]
        %v831 = vld [vmem:[%s231 + $0x198] sm:$0xff]
        %v832 = vld [vmem:[%s231 + $0x1a0] sm:$0xff]
        %v833 = vld [vmem:[%s231 + $0x1a8] sm:$0xff]
        %v834 = vld [vmem:[%s231 + $0x1b0] sm:$0xff]
        %v835 = vld [vmem:[%s231 + $0x1b8] sm:$0xff]
        %v836 = vld [vmem:[%s231 + $0x1c0] sm:$0xff]
        %v837 = vld [vmem:[%s231 + $0x1c8] sm:$0xff]
        %v838 = vld [vmem:[%s231 + $0x1d0] sm:$0xff]
        %v839 = vld [vmem:[%s231 + $0x1d8] sm:$0xff]
        %v840 = vld [vmem:[%s231 + $0x1e0] sm:$0xff]
        %v841 = vld [vmem:[%s231 + $0x1e8] sm:$0xff]
        %v842 = vld [vmem:[%s231 + $0x1f0] sm:$0xff]
        %v843 = vld [vmem:[%s231 + $0x1f8] sm:$0xff]
        %v844 = vld [vmem:[%s231 + $0x200] sm:$0xff]
        %v845 = vld [vmem:[%s231 + $0x208] sm:$0xff]
        %v846 = vld [vmem:[%s231 + $0x210] sm:$0xff]
        %v847 = vld [vmem:[%s231 + $0x218] sm:$0xff]
        %v848 = vld [vmem:[%s231 + $0x220] sm:$0xff]
        %v849 = vld [vmem:[%s231 + $0x228] sm:$0xff]
        %v850 = vld [vmem:[%s231 + $0x230] sm:$0xff]
        %v851 = vld [vmem:[%s231 + $0x238] sm:$0xff]
        %v852 = vld [vmem:[%s231 + $0x240] sm:$0xff]
        %v853 = vld [vmem:[%s231 + $0x248] sm:$0xff]
        %v854 = vld [vmem:[%s231 + $0x250] sm:$0xff]
        %v855 = vld [vmem:[%s231 + $0x258] sm:$0xff]
        %v856 = vld [vmem:[%s231 + $0x260] sm:$0xff]
        %v857 = vld [vmem:[%s231 + $0x268] sm:$0xff]
        %v858 = vld [vmem:[%s231 + $0x270] sm:$0xff]
        %v859 = vld [vmem:[%s231 + $0x278] sm:$0xff]
        %v860 = vld [vmem:[%s231 + $0x280] sm:$0xff]
        %v861 = vld [vmem:[%s231 + $0x288] sm:$0xff]
        %v862 = vld [vmem:[%s231 + $0x290] sm:$0xff]
        %v863 = vld [vmem:[%s231 + $0x298] sm:$0xff]
        %v864 = vld [vmem:[%s231 + $0x2a0] sm:$0xff]
        %v865 = vld [vmem:[%s231 + $0x2a8] sm:$0xff]
        %v866 = vld [vmem:[%s231 + $0x2b0] sm:$0xff]
        %v867 = vld [vmem:[%s231 + $0x2b8] sm:$0xff]
        %v868 = vld [vmem:[%s231 + $0x2c0] sm:$0xff]
        %v869 = vld [vmem:[%s231 + $0x2c8] sm:$0xff]
        %v870 = vld [vmem:[%s231 + $0x2d0] sm:$0xff]
        %v871 = vld [vmem:[%s231 + $0x2d8] sm:$0xff]
        %v872 = vld [vmem:[%s231 + $0x2e0] sm:$0xff]
        %v873 = vld [vmem:[%s231 + $0x2e8] sm:$0xff]
        %v874 = vld [vmem:[%s231 + $0x2f0] sm:$0xff]
        %v875 = vld [vmem:[%s231 + $0x2f8] sm:$0xff]
        %v876 = vld [vmem:[%s231 + $0x300] sm:$0xff]
        %v877 = vld [vmem:[%s231 + $0x308] sm:$0xff]
        %v878 = vld [vmem:[%s231 + $0x310] sm:$0xff]
        %v879 = vld [vmem:[%s231 + $0x318] sm:$0xff]
        %v880 = vld [vmem:[%s231 + $0x320] sm:$0xff]
        %v881 = vld [vmem:[%s231 + $0x328] sm:$0xff]
        %v882 = vld [vmem:[%s231 + $0x330] sm:$0xff]
        %v883 = vld [vmem:[%s231 + $0x338] sm:$0xff]
        %v884 = vld [vmem:[%s231 + $0x340] sm:$0xff]
        %v885 = vld [vmem:[%s231 + $0x348] sm:$0xff]
        %v886 = vld [vmem:[%s231 + $0x350] sm:$0xff]
        %v887 = vld [vmem:[%s231 + $0x358] sm:$0xff]
        %v888 = vld [vmem:[%s231 + $0x360] sm:$0xff]
        %v889 = vld [vmem:[%s231 + $0x368] sm:$0xff]
        %v890 = vld [vmem:[%s231 + $0x370] sm:$0xff]
        %v891 = vld [vmem:[%s231 + $0x378] sm:$0xff]
        %v892 = vld [vmem:[%s231 + $0x380] sm:$0xff]
        %v893 = vld [vmem:[%s231 + $0x388] sm:$0xff]
        %v894 = vld [vmem:[%s231 + $0x390] sm:$0xff]
        %v895 = vld [vmem:[%s231 + $0x398] sm:$0xff]
        %v896 = vld [vmem:[%s231 + $0x3a0] sm:$0xff]
        %v897 = vld [vmem:[%s231 + $0x3a8] sm:$0xff]
        %v898 = vld [vmem:[%s231 + $0x3b0] sm:$0xff]
        %v899 = vld [vmem:[%s231 + $0x3b8] sm:$0xff]
        %v900 = vld [vmem:[%s231 + $0x3c0] sm:$0xff]
        %v901 = vld [vmem:[%s231 + $0x3c8] sm:$0xff]
        %v902 = vld [vmem:[%s231 + $0x3d0] sm:$0xff]
        %v903 = vld [vmem:[%s231 + $0x3d8] sm:$0xff]
        %v904 = vld [vmem:[%s231 + $0x3e0] sm:$0xff]
        %v905 = vld [vmem:[%s231 + $0x3e8] sm:$0xff]
        %v906 = vld [vmem:[%s231 + $0x3f0] sm:$0xff]
        %v907 = vld [vmem:[%s231 + $0x3f8] sm:$0xff]
        %v908 = vld [vmem:[%s231 + $0x400] sm:$0xff]
        %v909 = vld [vmem:[%s231 + $0x408] sm:$0xff]
        %v910 = vld [vmem:[%s231 + $0x410] sm:$0xff]
        %v911 = vld [vmem:[%s231 + $0x418] sm:$0xff]
        %v912 = vld [vmem:[%s231 + $0x420] sm:$0xff]
        %v913 = vld [vmem:[%s231 + $0x428] sm:$0xff]
        %v914 = vld [vmem:[%s231 + $0x430] sm:$0xff]
        %v915 = vld [vmem:[%s231 + $0x438] sm:$0xff]
        %v916 = vld [vmem:[%s231 + $0x440] sm:$0xff]
        %v917 = vld [vmem:[%s231 + $0x448] sm:$0xff]
        %v918 = vld [vmem:[%s231 + $0x450] sm:$0xff]
        %v919 = vld [vmem:[%s231 + $0x458] sm:$0xff]
        %v920 = vld [vmem:[%s231 + $0x460] sm:$0xff]
        %v921 = vld [vmem:[%s231 + $0x468] sm:$0xff]
        %v922 = vld [vmem:[%s231 + $0x470] sm:$0xff]
        %v923 = vld [vmem:[%s231 + $0x478] sm:$0xff]
        %v924 = vld [vmem:[%s231 + $0x480] sm:$0xff]
        %v925 = vld [vmem:[%s231 + $0x488] sm:$0xff]
        %v926 = vld [vmem:[%s231 + $0x490] sm:$0xff]
        %v927 = vld [vmem:[%s231 + $0x498] sm:$0xff]
        %v928 = vld [vmem:[%s231 + $0x4a0] sm:$0xff]
        %v929 = vld [vmem:[%s231 + $0x4a8] sm:$0xff]
        %v930 = vld [vmem:[%s231 + $0x4b0] sm:$0xff]
        %v931 = vld [vmem:[%s231 + $0x4b8] sm:$0xff]
        %v932 = vld [vmem:[%s231 + $0x4c0] sm:$0xff]
        %v933 = vld [vmem:[%s231 + $0x4c8] sm:$0xff]
        %v934 = vld [vmem:[%s231 + $0x4d0] sm:$0xff]
        %v935 = vld [vmem:[%s231 + $0x4d8] sm:$0xff]
        %v936 = vld [vmem:[%s231 + $0x4e0] sm:$0xff]
        %v937 = vld [vmem:[%s231 + $0x4e8] sm:$0xff]
        %v938 = vld [vmem:[%s231 + $0x4f0] sm:$0xff]
        %v939 = vld [vmem:[%s231 + $0x4f8] sm:$0xff]
        %v940 = vld [vmem:[%s231 + $0x500] sm:$0xff]
        %v941 = vld [vmem:[%s231 + $0x508] sm:$0xff]
        %v942 = vld [vmem:[%s231 + $0x510] sm:$0xff]
        %v943 = vld [vmem:[%s231 + $0x518] sm:$0xff]
        %v944 = vld [vmem:[%s231 + $0x520] sm:$0xff]
        %v945 = vld [vmem:[%s231 + $0x528] sm:$0xff]
        %v946 = vld [vmem:[%s231 + $0x530] sm:$0xff]
        %v947 = vld [vmem:[%s231 + $0x538] sm:$0xff]
        %v948 = vld [vmem:[%s231 + $0x540] sm:$0xff]
        %v949 = vld [vmem:[%s231 + $0x548] sm:$0xff]
        %v950 = vld [vmem:[%s231 + $0x550] sm:$0xff]
        %v951 = vld [vmem:[%s231 + $0x558] sm:$0xff]
        %v952 = vld [vmem:[%s231 + $0x560] sm:$0xff]
        %v953 = vld [vmem:[%s231 + $0x568] sm:$0xff]
        %v954 = vld [vmem:[%s231 + $0x570] sm:$0xff]
        %v955 = vld [vmem:[%s231 + $0x578] sm:$0xff]
        %v956 = vld [vmem:[%s231 + $0x580] sm:$0xff]
        %v957 = vld [vmem:[%s231 + $0x588] sm:$0xff]
        %v958 = vld [vmem:[%s231 + $0x590] sm:$0xff]
        %v959 = vld [vmem:[%s231 + $0x598] sm:$0xff]
        %v960 = vld [vmem:[%s231 + $0x5a0] sm:$0xff]
        %v961 = vld [vmem:[%s231 + $0x5a8] sm:$0xff]
        %v962 = vld [vmem:[%s231 + $0x5b0] sm:$0xff]
        %v963 = vld [vmem:[%s231 + $0x5b8] sm:$0xff]
        %v964 = vld [vmem:[%s231 + $0x5c0] sm:$0xff]
        %v965 = vld [vmem:[%s231 + $0x5c8] sm:$0xff]
        %v966 = vld [vmem:[%s231 + $0x5d0] sm:$0xff]
        %v967 = vld [vmem:[%s231 + $0x5d8] sm:$0xff]
        %v968 = vld [vmem:[%s231 + $0x5e0] sm:$0xff]
        %v969 = vld [vmem:[%s231 + $0x5e8] sm:$0xff]
        %v970 = vld [vmem:[%s231 + $0x5f0] sm:$0xff]
        %v971 = vld [vmem:[%s231 + $0x5f8] sm:$0xff]
        %v972 = vld [vmem:[%s231 + $0x600] sm:$0xff]
        %v973 = vld [vmem:[%s231 + $0x608] sm:$0xff]
        %v974 = vld [vmem:[%s231 + $0x610] sm:$0xff]
        %v975 = vld [vmem:[%s231 + $0x618] sm:$0xff]
        %v976 = vld [vmem:[%s231 + $0x620] sm:$0xff]
        %v977 = vld [vmem:[%s231 + $0x628] sm:$0xff]
        %v978 = vld [vmem:[%s231 + $0x630] sm:$0xff]
        %v979 = vld [vmem:[%s231 + $0x638] sm:$0xff]
        %v980 = vld [vmem:[%s231 + $0x640] sm:$0xff]
        %v981 = vld [vmem:[%s231 + $0x648] sm:$0xff]
        %v982 = vld [vmem:[%s231 + $0x650] sm:$0xff]
        %v983 = vld [vmem:[%s231 + $0x658] sm:$0xff]
        %v984 = vld [vmem:[%s231 + $0x660] sm:$0xff]
        %v985 = vld [vmem:[%s231 + $0x668] sm:$0xff]
        %v986 = vld [vmem:[%s231 + $0x670] sm:$0xff]
        %v987 = vld [vmem:[%s231 + $0x678] sm:$0xff]
        %v988 = vld [vmem:[%s231 + $0x680] sm:$0xff]
        %v989 = vld [vmem:[%s231 + $0x688] sm:$0xff]
        %v990 = vld [vmem:[%s231 + $0x690] sm:$0xff]
        %v991 = vld [vmem:[%s231 + $0x698] sm:$0xff]
        %v992 = vld [vmem:[%s231 + $0x6a0] sm:$0xff]
        %v993 = vld [vmem:[%s231 + $0x6a8] sm:$0xff]
        %v994 = vld [vmem:[%s231 + $0x6b0] sm:$0xff]
        %v995 = vld [vmem:[%s231 + $0x6b8] sm:$0xff]
        %v996 = vld [vmem:[%s231 + $0x6c0] sm:$0xff]
        %v997 = vld [vmem:[%s231 + $0x6c8] sm:$0xff]
        %v998 = vld [vmem:[%s231 + $0x6d0] sm:$0xff]
        %v999 = vld [vmem:[%s231 + $0x6d8] sm:$0xff]
        %v1000 = vld [vmem:[%s231 + $0x6e0] sm:$0xff]
        %v1001 = vld [vmem:[%s231 + $0x6e8] sm:$0xff]
        %v1002 = vld [vmem:[%s231 + $0x6f0] sm:$0xff]
        %v1003 = vld [vmem:[%s231 + $0x6f8] sm:$0xff]
        %v1004 = vld [vmem:[%s231 + $0x700] sm:$0xff]
        %v1005 = vld [vmem:[%s231 + $0x708] sm:$0xff]
        %v1006 = vld [vmem:[%s231 + $0x710] sm:$0xff]
        %v1007 = vld [vmem:[%s231 + $0x718] sm:$0xff]
        %v1008 = vld [vmem:[%s231 + $0x720] sm:$0xff]
        %v1009 = vld [vmem:[%s231 + $0x728] sm:$0xff]
        %v1010 = vld [vmem:[%s231 + $0x730] sm:$0xff]
        %v1011 = vld [vmem:[%s231 + $0x738] sm:$0xff]
        %v1012 = vld [vmem:[%s231 + $0x740] sm:$0xff]
        %v1013 = vld [vmem:[%s231 + $0x748] sm:$0xff]
        %v1014 = vld [vmem:[%s231 + $0x750] sm:$0xff]
        %v1015 = vld [vmem:[%s231 + $0x758] sm:$0xff]
        %v1016 = vld [vmem:[%s231 + $0x760] sm:$0xff]
        %v1017 = vld [vmem:[%s231 + $0x768] sm:$0xff]
        %v1018 = vld [vmem:[%s231 + $0x770] sm:$0xff]
        %v1019 = vld [vmem:[%s231 + $0x778] sm:$0xff]
        %v1020 = vld [vmem:[%s231 + $0x780] sm:$0xff]
        %v1021 = vld [vmem:[%s231 + $0x788] sm:$0xff]
        %v1022 = vld [vmem:[%s231 + $0x790] sm:$0xff]
        %v1023 = vld [vmem:[%s231 + $0x798] sm:$0xff]
        %v1024 = vld [vmem:[%s231 + $0x7a0] sm:$0xff]
        %v1025 = vld [vmem:[%s231 + $0x7a8] sm:$0xff]
        %v1026 = vld [vmem:[%s231 + $0x7b0] sm:$0xff]
        %v1027 = vld [vmem:[%s231 + $0x7b8] sm:$0xff]
        %v1028 = vld [vmem:[%s231 + $0x7c0] sm:$0xff]
        %v1029 = vld [vmem:[%s231 + $0x7c8] sm:$0xff]
        %v1030 = vld [vmem:[%s231 + $0x7d0] sm:$0xff]
        %v1031 = vld [vmem:[%s231 + $0x7d8] sm:$0xff]
        %v1032 = vld [vmem:[%s231 + $0x7e0] sm:$0xff]
        %v1033 = vld [vmem:[%s231 + $0x7e8] sm:$0xff]
        %v1034 = vld [vmem:[%s231 + $0x7f0] sm:$0xff]
        %v1035 = vld [vmem:[%s231 + $0x7f8] sm:$0xff]
        %v1036 = vstv %s266
        %v1037 = vmul.f32 %v780, %v1036
        %v1038 = vmul.f32 %v781, %v1036
        %v1039 = vmul.f32 %v782, %v1036
        %v1040 = vmul.f32 %v783, %v1036
        %v1041 = vmul.f32 %v784, %v1036
        %v1042 = vmul.f32 %v785, %v1036
        %v1043 = vmul.f32 %v786, %v1036
        %v1044 = vmul.f32 %v787, %v1036
        %v1045 = vmul.f32 %v788, %v1036
        %v1046 = vmul.f32 %v789, %v1036
        %v1047 = vmul.f32 %v790, %v1036
        %v1048 = vmul.f32 %v791, %v1036
        %v1049 = vmul.f32 %v792, %v1036
        %v1050 = vmul.f32 %v793, %v1036
        %v1051 = vmul.f32 %v794, %v1036
        %v1052 = vmul.f32 %v795, %v1036
        %v1053 = vmul.f32 %v796, %v1036
        %v1054 = vmul.f32 %v797, %v1036
        %v1055 = vmul.f32 %v798, %v1036
        %v1056 = vmul.f32 %v799, %v1036
        %v1057 = vmul.f32 %v800, %v1036
        %v1058 = vmul.f32 %v801, %v1036
        %v1059 = vmul.f32 %v802, %v1036
        %v1060 = vmul.f32 %v803, %v1036
        %v1061 = vmul.f32 %v804, %v1036
        %v1062 = vmul.f32 %v805, %v1036
        %v1063 = vmul.f32 %v806, %v1036
        %v1064 = vmul.f32 %v807, %v1036
        %v1065 = vmul.f32 %v808, %v1036
        %v1066 = vmul.f32 %v809, %v1036
        %v1067 = vmul.f32 %v810, %v1036
        %v1068 = vmul.f32 %v811, %v1036
        %v1069 = vmul.f32 %v812, %v1036
        %v1070 = vmul.f32 %v813, %v1036
        %v1071 = vmul.f32 %v814, %v1036
        %v1072 = vmul.f32 %v815, %v1036
        %v1073 = vmul.f32 %v816, %v1036
        %v1074 = vmul.f32 %v817, %v1036
        %v1075 = vmul.f32 %v818, %v1036
        %v1076 = vmul.f32 %v819, %v1036
        %v1077 = vmul.f32 %v820, %v1036
        %v1078 = vmul.f32 %v821, %v1036
        %v1079 = vmul.f32 %v822, %v1036
        %v1080 = vmul.f32 %v823, %v1036
        %v1081 = vmul.f32 %v824, %v1036
        %v1082 = vmul.f32 %v825, %v1036
        %v1083 = vmul.f32 %v826, %v1036
        %v1084 = vmul.f32 %v827, %v1036
        %v1085 = vmul.f32 %v828, %v1036
        %v1086 = vmul.f32 %v829, %v1036
        %v1087 = vmul.f32 %v830, %v1036
        %v1088 = vmul.f32 %v831, %v1036
        %v1089 = vmul.f32 %v832, %v1036
        %v1090 = vmul.f32 %v833, %v1036
        %v1091 = vmul.f32 %v834, %v1036
        %v1092 = vmul.f32 %v835, %v1036
        %v1093 = vmul.f32 %v836, %v1036
        %v1094 = vmul.f32 %v837, %v1036
        %v1095 = vmul.f32 %v838, %v1036
        %v1096 = vmul.f32 %v839, %v1036
        %v1097 = vmul.f32 %v840, %v1036
        %v1098 = vmul.f32 %v841, %v1036
        %v1099 = vmul.f32 %v842, %v1036
        %v1100 = vmul.f32 %v843, %v1036
        %v1101 = vmul.f32 %v844, %v1036
        %v1102 = vmul.f32 %v845, %v1036
        %v1103 = vmul.f32 %v846, %v1036
        %v1104 = vmul.f32 %v847, %v1036
        %v1105 = vmul.f32 %v848, %v1036
        %v1106 = vmul.f32 %v849, %v1036
        %v1107 = vmul.f32 %v850, %v1036
        %v1108 = vmul.f32 %v851, %v1036
        %v1109 = vmul.f32 %v852, %v1036
        %v1110 = vmul.f32 %v853, %v1036
        %v1111 = vmul.f32 %v854, %v1036
        %v1112 = vmul.f32 %v855, %v1036
        %v1113 = vmul.f32 %v856, %v1036
        %v1114 = vmul.f32 %v857, %v1036
        %v1115 = vmul.f32 %v858, %v1036
        %v1116 = vmul.f32 %v859, %v1036
        %v1117 = vmul.f32 %v860, %v1036
        %v1118 = vmul.f32 %v861, %v1036
        %v1119 = vmul.f32 %v862, %v1036
        %v1120 = vmul.f32 %v863, %v1036
        %v1121 = vmul.f32 %v864, %v1036
        %v1122 = vmul.f32 %v865, %v1036
        %v1123 = vmul.f32 %v866, %v1036
        %v1124 = vmul.f32 %v867, %v1036
        %v1125 = vmul.f32 %v868, %v1036
        %v1126 = vmul.f32 %v869, %v1036
        %v1127 = vmul.f32 %v870, %v1036
        %v1128 = vmul.f32 %v871, %v1036
        %v1129 = vmul.f32 %v872, %v1036
        %v1130 = vmul.f32 %v873, %v1036
        %v1131 = vmul.f32 %v874, %v1036
        %v1132 = vmul.f32 %v875, %v1036
        %v1133 = vmul.f32 %v876, %v1036
        %v1134 = vmul.f32 %v877, %v1036
        %v1135 = vmul.f32 %v878, %v1036
        %v1136 = vmul.f32 %v879, %v1036
        %v1137 = vmul.f32 %v880, %v1036
        %v1138 = vmul.f32 %v881, %v1036
        %v1139 = vmul.f32 %v882, %v1036
        %v1140 = vmul.f32 %v883, %v1036
        %v1141 = vmul.f32 %v884, %v1036
        %v1142 = vmul.f32 %v885, %v1036
        %v1143 = vmul.f32 %v886, %v1036
        %v1144 = vmul.f32 %v887, %v1036
        %v1145 = vmul.f32 %v888, %v1036
        %v1146 = vmul.f32 %v889, %v1036
        %v1147 = vmul.f32 %v890, %v1036
        %v1148 = vmul.f32 %v891, %v1036
        %v1149 = vmul.f32 %v892, %v1036
        %v1150 = vmul.f32 %v893, %v1036
        %v1151 = vmul.f32 %v894, %v1036
        %v1152 = vmul.f32 %v895, %v1036
        %v1153 = vmul.f32 %v896, %v1036
        %v1154 = vmul.f32 %v897, %v1036
        %v1155 = vmul.f32 %v898, %v1036
        %v1156 = vmul.f32 %v899, %v1036
        %v1157 = vmul.f32 %v900, %v1036
        %v1158 = vmul.f32 %v901, %v1036
        %v1159 = vmul.f32 %v902, %v1036
        %v1160 = vmul.f32 %v903, %v1036
        %v1161 = vmul.f32 %v904, %v1036
        %v1162 = vmul.f32 %v905, %v1036
        %v1163 = vmul.f32 %v906, %v1036
        %v1164 = vmul.f32 %v907, %v1036
        %v1165 = vmul.f32 %v908, %v1036
        %v1166 = vmul.f32 %v909, %v1036
        %v1167 = vmul.f32 %v910, %v1036
        %v1168 = vmul.f32 %v911, %v1036
        %v1169 = vmul.f32 %v912, %v1036
        %v1170 = vmul.f32 %v913, %v1036
        %v1171 = vmul.f32 %v914, %v1036
        %v1172 = vmul.f32 %v915, %v1036
        %v1173 = vmul.f32 %v916, %v1036
        %v1174 = vmul.f32 %v917, %v1036
        %v1175 = vmul.f32 %v918, %v1036
        %v1176 = vmul.f32 %v919, %v1036
        %v1177 = vmul.f32 %v920, %v1036
        %v1178 = vmul.f32 %v921, %v1036
        %v1179 = vmul.f32 %v922, %v1036
        %v1180 = vmul.f32 %v923, %v1036
        %v1181 = vmul.f32 %v924, %v1036
        %v1182 = vmul.f32 %v925, %v1036
        %v1183 = vmul.f32 %v926, %v1036
        %v1184 = vmul.f32 %v927, %v1036
        %v1185 = vmul.f32 %v928, %v1036
        %v1186 = vmul.f32 %v929, %v1036
        %v1187 = vmul.f32 %v930, %v1036
        %v1188 = vmul.f32 %v931, %v1036
        %v1189 = vmul.f32 %v932, %v1036
        %v1190 = vmul.f32 %v933, %v1036
        %v1191 = vmul.f32 %v934, %v1036
        %v1192 = vmul.f32 %v935, %v1036
        %v1193 = vmul.f32 %v936, %v1036
        %v1194 = vmul.f32 %v937, %v1036
        %v1195 = vmul.f32 %v938, %v1036
        %v1196 = vmul.f32 %v939, %v1036
        %v1197 = vmul.f32 %v940, %v1036
        %v1198 = vmul.f32 %v941, %v1036
        %v1199 = vmul.f32 %v942, %v1036
        %v1200 = vmul.f32 %v943, %v1036
        %v1201 = vmul.f32 %v944, %v1036
        %v1202 = vmul.f32 %v945, %v1036
        %v1203 = vmul.f32 %v946, %v1036
        %v1204 = vmul.f32 %v947, %v1036
        %v1205 = vmul.f32 %v948, %v1036
        %v1206 = vmul.f32 %v949, %v1036
        %v1207 = vmul.f32 %v950, %v1036
        %v1208 = vmul.f32 %v951, %v1036
        %v1209 = vmul.f32 %v952, %v1036
        %v1210 = vmul.f32 %v953, %v1036
        %v1211 = vmul.f32 %v954, %v1036
        %v1212 = vmul.f32 %v955, %v1036
        %v1213 = vmul.f32 %v956, %v1036
        %v1214 = vmul.f32 %v957, %v1036
        %v1215 = vmul.f32 %v958, %v1036
        %v1216 = vmul.f32 %v959, %v1036
        %v1217 = vmul.f32 %v960, %v1036
        %v1218 = vmul.f32 %v961, %v1036
        %v1219 = vmul.f32 %v962, %v1036
        %v1220 = vmul.f32 %v963, %v1036
        %v1221 = vmul.f32 %v964, %v1036
        %v1222 = vmul.f32 %v965, %v1036
        %v1223 = vmul.f32 %v966, %v1036
        %v1224 = vmul.f32 %v967, %v1036
        %v1225 = vmul.f32 %v968, %v1036
        %v1226 = vmul.f32 %v969, %v1036
        %v1227 = vmul.f32 %v970, %v1036
        %v1228 = vmul.f32 %v971, %v1036
        %v1229 = vmul.f32 %v972, %v1036
        %v1230 = vmul.f32 %v973, %v1036
        %v1231 = vmul.f32 %v974, %v1036
        %v1232 = vmul.f32 %v975, %v1036
        %v1233 = vmul.f32 %v976, %v1036
        %v1234 = vmul.f32 %v977, %v1036
        %v1235 = vmul.f32 %v978, %v1036
        %v1236 = vmul.f32 %v979, %v1036
        %v1237 = vmul.f32 %v980, %v1036
        %v1238 = vmul.f32 %v981, %v1036
        %v1239 = vmul.f32 %v982, %v1036
        %v1240 = vmul.f32 %v983, %v1036
        %v1241 = vmul.f32 %v984, %v1036
        %v1242 = vmul.f32 %v985, %v1036
        %v1243 = vmul.f32 %v986, %v1036
        %v1244 = vmul.f32 %v987, %v1036
        %v1245 = vmul.f32 %v988, %v1036
        %v1246 = vmul.f32 %v989, %v1036
        %v1247 = vmul.f32 %v990, %v1036
        %v1248 = vmul.f32 %v991, %v1036
        %v1249 = vmul.f32 %v992, %v1036
        %v1250 = vmul.f32 %v993, %v1036
        %v1251 = vmul.f32 %v994, %v1036
        %v1252 = vmul.f32 %v995, %v1036
        %v1253 = vmul.f32 %v996, %v1036
        %v1254 = vmul.f32 %v997, %v1036
        %v1255 = vmul.f32 %v998, %v1036
        %v1256 = vmul.f32 %v999, %v1036
        %v1257 = vmul.f32 %v1000, %v1036
        %v1258 = vmul.f32 %v1001, %v1036
        %v1259 = vmul.f32 %v1002, %v1036
        %v1260 = vmul.f32 %v1003, %v1036
        %v1261 = vmul.f32 %v1004, %v1036
        %v1262 = vmul.f32 %v1005, %v1036
        %v1263 = vmul.f32 %v1006, %v1036
        %v1264 = vmul.f32 %v1007, %v1036
        %v1265 = vmul.f32 %v1008, %v1036
        %v1266 = vmul.f32 %v1009, %v1036
        %v1267 = vmul.f32 %v1010, %v1036
        %v1268 = vmul.f32 %v1011, %v1036
        %v1269 = vmul.f32 %v1012, %v1036
        %v1270 = vmul.f32 %v1013, %v1036
        %v1271 = vmul.f32 %v1014, %v1036
        %v1272 = vmul.f32 %v1015, %v1036
        %v1273 = vmul.f32 %v1016, %v1036
        %v1274 = vmul.f32 %v1017, %v1036
        %v1275 = vmul.f32 %v1018, %v1036
        %v1276 = vmul.f32 %v1019, %v1036
        %v1277 = vmul.f32 %v1020, %v1036
        %v1278 = vmul.f32 %v1021, %v1036
        %v1279 = vmul.f32 %v1022, %v1036
        %v1280 = vmul.f32 %v1023, %v1036
        %v1281 = vmul.f32 %v1024, %v1036
        %v1282 = vmul.f32 %v1025, %v1036
        %v1283 = vmul.f32 %v1026, %v1036
        %v1284 = vmul.f32 %v1027, %v1036
        %v1285 = vmul.f32 %v1028, %v1036
        %v1286 = vmul.f32 %v1029, %v1036
        %v1287 = vmul.f32 %v1030, %v1036
        %v1288 = vmul.f32 %v1031, %v1036
        %v1289 = vmul.f32 %v1032, %v1036
        %v1290 = vmul.f32 %v1033, %v1036
        %v1291 = vmul.f32 %v1034, %v1036
        %v1292 = vmul.f32 %v1035, %v1036
        %v1293 = vadd.f32 %v524, %v1037
        %v1294 = vadd.f32 %v525, %v1038
        %v1295 = vadd.f32 %v526, %v1039
        %v1296 = vadd.f32 %v527, %v1040
        %v1297 = vadd.f32 %v528, %v1041
        %v1298 = vadd.f32 %v529, %v1042
        %v1299 = vadd.f32 %v530, %v1043
        %v1300 = vadd.f32 %v531, %v1044
        %v1301 = vadd.f32 %v532, %v1045
        %v1302 = vadd.f32 %v533, %v1046
        %v1303 = vadd.f32 %v534, %v1047
        %v1304 = vadd.f32 %v535, %v1048
        %v1305 = vadd.f32 %v536, %v1049
        %v1306 = vadd.f32 %v537, %v1050
        %v1307 = vadd.f32 %v538, %v1051
        %v1308 = vadd.f32 %v539, %v1052
        %v1309 = vadd.f32 %v540, %v1053
        %v1310 = vadd.f32 %v541, %v1054
        %v1311 = vadd.f32 %v542, %v1055
        %v1312 = vadd.f32 %v543, %v1056
        %v1313 = vadd.f32 %v544, %v1057
        %v1314 = vadd.f32 %v545, %v1058
        %v1315 = vadd.f32 %v546, %v1059
        %v1316 = vadd.f32 %v547, %v1060
        %v1317 = vadd.f32 %v548, %v1061
        %v1318 = vadd.f32 %v549, %v1062
        %v1319 = vadd.f32 %v550, %v1063
        %v1320 = vadd.f32 %v551, %v1064
        %v1321 = vadd.f32 %v552, %v1065
        %v1322 = vadd.f32 %v553, %v1066
        %v1323 = vadd.f32 %v554, %v1067
        %v1324 = vadd.f32 %v555, %v1068
        %v1325 = vadd.f32 %v556, %v1069
        %v1326 = vadd.f32 %v557, %v1070
        %v1327 = vadd.f32 %v558, %v1071
        %v1328 = vadd.f32 %v559, %v1072
        %v1329 = vadd.f32 %v560, %v1073
        %v1330 = vadd.f32 %v561, %v1074
        %v1331 = vadd.f32 %v562, %v1075
        %v1332 = vadd.f32 %v563, %v1076
        %v1333 = vadd.f32 %v564, %v1077
        %v1334 = vadd.f32 %v565, %v1078
        %v1335 = vadd.f32 %v566, %v1079
        %v1336 = vadd.f32 %v567, %v1080
        %v1337 = vadd.f32 %v568, %v1081
        %v1338 = vadd.f32 %v569, %v1082
        %v1339 = vadd.f32 %v570, %v1083
        %v1340 = vadd.f32 %v571, %v1084
        %v1341 = vadd.f32 %v572, %v1085
        %v1342 = vadd.f32 %v573, %v1086
        %v1343 = vadd.f32 %v574, %v1087
        %v1344 = vadd.f32 %v575, %v1088
        %v1345 = vadd.f32 %v576, %v1089
        %v1346 = vadd.f32 %v577, %v1090
        %v1347 = vadd.f32 %v578, %v1091
        %v1348 = vadd.f32 %v579, %v1092
        %v1349 = vadd.f32 %v580, %v1093
        %v1350 = vadd.f32 %v581, %v1094
        %v1351 = vadd.f32 %v582, %v1095
        %v1352 = vadd.f32 %v583, %v1096
        %v1353 = vadd.f32 %v584, %v1097
        %v1354 = vadd.f32 %v585, %v1098
        %v1355 = vadd.f32 %v586, %v1099
        %v1356 = vadd.f32 %v587, %v1100
        %v1357 = vadd.f32 %v588, %v1101
        %v1358 = vadd.f32 %v589, %v1102
        %v1359 = vadd.f32 %v590, %v1103
        %v1360 = vadd.f32 %v591, %v1104
        %v1361 = vadd.f32 %v592, %v1105
        %v1362 = vadd.f32 %v593, %v1106
        %v1363 = vadd.f32 %v594, %v1107
        %v1364 = vadd.f32 %v595, %v1108
        %v1365 = vadd.f32 %v596, %v1109
        %v1366 = vadd.f32 %v597, %v1110
        %v1367 = vadd.f32 %v598, %v1111
        %v1368 = vadd.f32 %v599, %v1112
        %v1369 = vadd.f32 %v600, %v1113
        %v1370 = vadd.f32 %v601, %v1114
        %v1371 = vadd.f32 %v602, %v1115
        %v1372 = vadd.f32 %v603, %v1116
        %v1373 = vadd.f32 %v604, %v1117
        %v1374 = vadd.f32 %v605, %v1118
        %v1375 = vadd.f32 %v606, %v1119
        %v1376 = vadd.f32 %v607, %v1120
        %v1377 = vadd.f32 %v608, %v1121
        %v1378 = vadd.f32 %v609, %v1122
        %v1379 = vadd.f32 %v610, %v1123
        %v1380 = vadd.f32 %v611, %v1124
        %v1381 = vadd.f32 %v612, %v1125
        %v1382 = vadd.f32 %v613, %v1126
        %v1383 = vadd.f32 %v614, %v1127
        %v1384 = vadd.f32 %v615, %v1128
        %v1385 = vadd.f32 %v616, %v1129
        %v1386 = vadd.f32 %v617, %v1130
        %v1387 = vadd.f32 %v618, %v1131
        %v1388 = vadd.f32 %v619, %v1132
        %v1389 = vadd.f32 %v620, %v1133
        %v1390 = vadd.f32 %v621, %v1134
        %v1391 = vadd.f32 %v622, %v1135
        %v1392 = vadd.f32 %v623, %v1136
        %v1393 = vadd.f32 %v624, %v1137
        %v1394 = vadd.f32 %v625, %v1138
        %v1395 = vadd.f32 %v626, %v1139
        %v1396 = vadd.f32 %v627, %v1140
        %v1397 = vadd.f32 %v628, %v1141
        %v1398 = vadd.f32 %v629, %v1142
        %v1399 = vadd.f32 %v630, %v1143
        %v1400 = vadd.f32 %v631, %v1144
        %v1401 = vadd.f32 %v632, %v1145
        %v1402 = vadd.f32 %v633, %v1146
        %v1403 = vadd.f32 %v634, %v1147
        %v1404 = vadd.f32 %v635, %v1148
        %v1405 = vadd.f32 %v636, %v1149
        %v1406 = vadd.f32 %v637, %v1150
        %v1407 = vadd.f32 %v638, %v1151
        %v1408 = vadd.f32 %v639, %v1152
        %v1409 = vadd.f32 %v640, %v1153
        %v1410 = vadd.f32 %v641, %v1154
        %v1411 = vadd.f32 %v642, %v1155
        %v1412 = vadd.f32 %v643, %v1156
        %v1413 = vadd.f32 %v644, %v1157
        %v1414 = vadd.f32 %v645, %v1158
        %v1415 = vadd.f32 %v646, %v1159
        %v1416 = vadd.f32 %v647, %v1160
        %v1417 = vadd.f32 %v648, %v1161
        %v1418 = vadd.f32 %v649, %v1162
        %v1419 = vadd.f32 %v650, %v1163
        %v1420 = vadd.f32 %v651, %v1164
        %v1421 = vadd.f32 %v652, %v1165
        %v1422 = vadd.f32 %v653, %v1166
        %v1423 = vadd.f32 %v654, %v1167
        %v1424 = vadd.f32 %v655, %v1168
        %v1425 = vadd.f32 %v656, %v1169
        %v1426 = vadd.f32 %v657, %v1170
        %v1427 = vadd.f32 %v658, %v1171
        %v1428 = vadd.f32 %v659, %v1172
        %v1429 = vadd.f32 %v660, %v1173
        %v1430 = vadd.f32 %v661, %v1174
        %v1431 = vadd.f32 %v662, %v1175
        %v1432 = vadd.f32 %v663, %v1176
        %v1433 = vadd.f32 %v664, %v1177
        %v1434 = vadd.f32 %v665, %v1178
        %v1435 = vadd.f32 %v666, %v1179
        %v1436 = vadd.f32 %v667, %v1180
        %v1437 = vadd.f32 %v668, %v1181
        %v1438 = vadd.f32 %v669, %v1182
        %v1439 = vadd.f32 %v670, %v1183
        %v1440 = vadd.f32 %v671, %v1184
        %v1441 = vadd.f32 %v672, %v1185
        %v1442 = vadd.f32 %v673, %v1186
        %v1443 = vadd.f32 %v674, %v1187
        %v1444 = vadd.f32 %v675, %v1188
        %v1445 = vadd.f32 %v676, %v1189
        %v1446 = vadd.f32 %v677, %v1190
        %v1447 = vadd.f32 %v678, %v1191
        %v1448 = vadd.f32 %v679, %v1192
        %v1449 = vadd.f32 %v680, %v1193
        %v1450 = vadd.f32 %v681, %v1194
        %v1451 = vadd.f32 %v682, %v1195
        %v1452 = vadd.f32 %v683, %v1196
        %v1453 = vadd.f32 %v684, %v1197
        %v1454 = vadd.f32 %v685, %v1198
        %v1455 = vadd.f32 %v686, %v1199
        %v1456 = vadd.f32 %v687, %v1200
        %v1457 = vadd.f32 %v688, %v1201
        %v1458 = vadd.f32 %v689, %v1202
        %v1459 = vadd.f32 %v690, %v1203
        %v1460 = vadd.f32 %v691, %v1204
        %v1461 = vadd.f32 %v692, %v1205
        %v1462 = vadd.f32 %v693, %v1206
        %v1463 = vadd.f32 %v694, %v1207
        %v1464 = vadd.f32 %v695, %v1208
        %v1465 = vadd.f32 %v696, %v1209
        %v1466 = vadd.f32 %v697, %v1210
        %v1467 = vadd.f32 %v698, %v1211
        %v1468 = vadd.f32 %v699, %v1212
        %v1469 = vadd.f32 %v700, %v1213
        %v1470 = vadd.f32 %v701, %v1214
        %v1471 = vadd.f32 %v702, %v1215
        %v1472 = vadd.f32 %v703, %v1216
        %v1473 = vadd.f32 %v704, %v1217
        %v1474 = vadd.f32 %v705, %v1218
        %v1475 = vadd.f32 %v706, %v1219
        %v1476 = vadd.f32 %v707, %v1220
        %v1477 = vadd.f32 %v708, %v1221
        %v1478 = vadd.f32 %v709, %v1222
        %v1479 = vadd.f32 %v710, %v1223
        %v1480 = vadd.f32 %v711, %v1224
        %v1481 = vadd.f32 %v712, %v1225
        %v1482 = vadd.f32 %v713, %v1226
        %v1483 = vadd.f32 %v714, %v1227
        %v1484 = vadd.f32 %v715, %v1228
        %v1485 = vadd.f32 %v716, %v1229
        %v1486 = vadd.f32 %v717, %v1230
        %v1487 = vadd.f32 %v718, %v1231
        %v1488 = vadd.f32 %v719, %v1232
        %v1489 = vadd.f32 %v720, %v1233
        %v1490 = vadd.f32 %v721, %v1234
        %v1491 = vadd.f32 %v722, %v1235
        %v1492 = vadd.f32 %v723, %v1236
        %v1493 = vadd.f32 %v724, %v1237
        %v1494 = vadd.f32 %v725, %v1238
        %v1495 = vadd.f32 %v726, %v1239
        %v1496 = vadd.f32 %v727, %v1240
        %v1497 = vadd.f32 %v728, %v1241
        %v1498 = vadd.f32 %v729, %v1242
        %v1499 = vadd.f32 %v730, %v1243
        %v1500 = vadd.f32 %v731, %v1244
        %v1501 = vadd.f32 %v732, %v1245
        %v1502 = vadd.f32 %v733, %v1246
        %v1503 = vadd.f32 %v734, %v1247
        %v1504 = vadd.f32 %v735, %v1248
        %v1505 = vadd.f32 %v736, %v1249
        %v1506 = vadd.f32 %v737, %v1250
        %v1507 = vadd.f32 %v738, %v1251
        %v1508 = vadd.f32 %v739, %v1252
        %v1509 = vadd.f32 %v740, %v1253
        %v1510 = vadd.f32 %v741, %v1254
        %v1511 = vadd.f32 %v742, %v1255
        %v1512 = vadd.f32 %v743, %v1256
        %v1513 = vadd.f32 %v744, %v1257
        %v1514 = vadd.f32 %v745, %v1258
        %v1515 = vadd.f32 %v746, %v1259
        %v1516 = vadd.f32 %v747, %v1260
        %v1517 = vadd.f32 %v748, %v1261
        %v1518 = vadd.f32 %v749, %v1262
        %v1519 = vadd.f32 %v750, %v1263
        %v1520 = vadd.f32 %v751, %v1264
        %v1521 = vadd.f32 %v752, %v1265
        %v1522 = vadd.f32 %v753, %v1266
        %v1523 = vadd.f32 %v754, %v1267
        %v1524 = vadd.f32 %v755, %v1268
        %v1525 = vadd.f32 %v756, %v1269
        %v1526 = vadd.f32 %v757, %v1270
        %v1527 = vadd.f32 %v758, %v1271
        %v1528 = vadd.f32 %v759, %v1272
        %v1529 = vadd.f32 %v760, %v1273
        %v1530 = vadd.f32 %v761, %v1274
        %v1531 = vadd.f32 %v762, %v1275
        %v1532 = vadd.f32 %v763, %v1276
        %v1533 = vadd.f32 %v764, %v1277
        %v1534 = vadd.f32 %v765, %v1278
        %v1535 = vadd.f32 %v766, %v1279
        %v1536 = vadd.f32 %v767, %v1280
        %v1537 = vadd.f32 %v768, %v1281
        %v1538 = vadd.f32 %v769, %v1282
        %v1539 = vadd.f32 %v770, %v1283
        %v1540 = vadd.f32 %v771, %v1284
        %v1541 = vadd.f32 %v772, %v1285
        %v1542 = vadd.f32 %v773, %v1286
        %v1543 = vadd.f32 %v774, %v1287
        %v1544 = vadd.f32 %v775, %v1288
        %v1545 = vadd.f32 %v776, %v1289
        %v1546 = vadd.f32 %v777, %v1290
        %v1547 = vadd.f32 %v778, %v1291
        %v1548 = vadd.f32 %v779, %v1292
        %1549 = vst [vmem:[%s261] sm:$0xff] %v1293
        %1550 = vst [vmem:[%s261 + $0x8] sm:$0xff] %v1294
        %1551 = vst [vmem:[%s261 + $0x10] sm:$0xff] %v1295
        %1552 = vst [vmem:[%s261 + $0x18] sm:$0xff] %v1296
        %1553 = vst [vmem:[%s261 + $0x20] sm:$0xff] %v1297
        %1554 = vst [vmem:[%s261 + $0x28] sm:$0xff] %v1298
        %1555 = vst [vmem:[%s261 + $0x30] sm:$0xff] %v1299
        %1556 = vst [vmem:[%s261 + $0x38] sm:$0xff] %v1300
        %1557 = vst [vmem:[%s261 + $0x40] sm:$0xff] %v1301
        %1558 = vst [vmem:[%s261 + $0x48] sm:$0xff] %v1302
        %1559 = vst [vmem:[%s261 + $0x50] sm:$0xff] %v1303
        %1560 = vst [vmem:[%s261 + $0x58] sm:$0xff] %v1304
        %1561 = vst [vmem:[%s261 + $0x60] sm:$0xff] %v1305
        %1562 = vst [vmem:[%s261 + $0x68] sm:$0xff] %v1306
        %1563 = vst [vmem:[%s261 + $0x70] sm:$0xff] %v1307
        %1564 = vst [vmem:[%s261 + $0x78] sm:$0xff] %v1308
        %1565 = vst [vmem:[%s261 + $0x80] sm:$0xff] %v1309
        %1566 = vst [vmem:[%s261 + $0x88] sm:$0xff] %v1310
        %1567 = vst [vmem:[%s261 + $0x90] sm:$0xff] %v1311
        %1568 = vst [vmem:[%s261 + $0x98] sm:$0xff] %v1312
        %1569 = vst [vmem:[%s261 + $0xa0] sm:$0xff] %v1313
        %1570 = vst [vmem:[%s261 + $0xa8] sm:$0xff] %v1314
        %1571 = vst [vmem:[%s261 + $0xb0] sm:$0xff] %v1315
        %1572 = vst [vmem:[%s261 + $0xb8] sm:$0xff] %v1316
        %1573 = vst [vmem:[%s261 + $0xc0] sm:$0xff] %v1317
        %1574 = vst [vmem:[%s261 + $0xc8] sm:$0xff] %v1318
        %1575 = vst [vmem:[%s261 + $0xd0] sm:$0xff] %v1319
        %1576 = vst [vmem:[%s261 + $0xd8] sm:$0xff] %v1320
        %1577 = vst [vmem:[%s261 + $0xe0] sm:$0xff] %v1321
        %1578 = vst [vmem:[%s261 + $0xe8] sm:$0xff] %v1322
        %1579 = vst [vmem:[%s261 + $0xf0] sm:$0xff] %v1323
        %1580 = vst [vmem:[%s261 + $0xf8] sm:$0xff] %v1324
        %1581 = vst [vmem:[%s261 + $0x100] sm:$0xff] %v1325
        %1582 = vst [vmem:[%s261 + $0x108] sm:$0xff] %v1326
        %1583 = vst [vmem:[%s261 + $0x110] sm:$0xff] %v1327
        %1584 = vst [vmem:[%s261 + $0x118] sm:$0xff] %v1328
        %1585 = vst [vmem:[%s261 + $0x120] sm:$0xff] %v1329
        %1586 = vst [vmem:[%s261 + $0x128] sm:$0xff] %v1330
        %1587 = vst [vmem:[%s261 + $0x130] sm:$0xff] %v1331
        %1588 = vst [vmem:[%s261 + $0x138] sm:$0xff] %v1332
        %1589 = vst [vmem:[%s261 + $0x140] sm:$0xff] %v1333
        %1590 = vst [vmem:[%s261 + $0x148] sm:$0xff] %v1334
        %1591 = vst [vmem:[%s261 + $0x150] sm:$0xff] %v1335
        %1592 = vst [vmem:[%s261 + $0x158] sm:$0xff] %v1336
        %1593 = vst [vmem:[%s261 + $0x160] sm:$0xff] %v1337
        %1594 = vst [vmem:[%s261 + $0x168] sm:$0xff] %v1338
        %1595 = vst [vmem:[%s261 + $0x170] sm:$0xff] %v1339
        %1596 = vst [vmem:[%s261 + $0x178] sm:$0xff] %v1340
        %1597 = vst [vmem:[%s261 + $0x180] sm:$0xff] %v1341
        %1598 = vst [vmem:[%s261 + $0x188] sm:$0xff] %v1342
        %1599 = vst [vmem:[%s261 + $0x190] sm:$0xff] %v1343
        %1600 = vst [vmem:[%s261 + $0x198] sm:$0xff] %v1344
        %1601 = vst [vmem:[%s261 + $0x1a0] sm:$0xff] %v1345
        %1602 = vst [vmem:[%s261 + $0x1a8] sm:$0xff] %v1346
        %1603 = vst [vmem:[%s261 + $0x1b0] sm:$0xff] %v1347
        %1604 = vst [vmem:[%s261 + $0x1b8] sm:$0xff] %v1348
        %1605 = vst [vmem:[%s261 + $0x1c0] sm:$0xff] %v1349
        %1606 = vst [vmem:[%s261 + $0x1c8] sm:$0xff] %v1350
        %1607 = vst [vmem:[%s261 + $0x1d0] sm:$0xff] %v1351
        %1608 = vst [vmem:[%s261 + $0x1d8] sm:$0xff] %v1352
        %1609 = vst [vmem:[%s261 + $0x1e0] sm:$0xff] %v1353
        %1610 = vst [vmem:[%s261 + $0x1e8] sm:$0xff] %v1354
        %1611 = vst [vmem:[%s261 + $0x1f0] sm:$0xff] %v1355
        %1612 = vst [vmem:[%s261 + $0x1f8] sm:$0xff] %v1356
        %1613 = vst [vmem:[%s261 + $0x200] sm:$0xff] %v1357
        %1614 = vst [vmem:[%s261 + $0x208] sm:$0xff] %v1358
        %1615 = vst [vmem:[%s261 + $0x210] sm:$0xff] %v1359
        %1616 = vst [vmem:[%s261 + $0x218] sm:$0xff] %v1360
        %1617 = vst [vmem:[%s261 + $0x220] sm:$0xff] %v1361
        %1618 = vst [vmem:[%s261 + $0x228] sm:$0xff] %v1362
        %1619 = vst [vmem:[%s261 + $0x230] sm:$0xff] %v1363
        %1620 = vst [vmem:[%s261 + $0x238] sm:$0xff] %v1364
        %1621 = vst [vmem:[%s261 + $0x240] sm:$0xff] %v1365
        %1622 = vst [vmem:[%s261 + $0x248] sm:$0xff] %v1366
        %1623 = vst [vmem:[%s261 + $0x250] sm:$0xff] %v1367
        %1624 = vst [vmem:[%s261 + $0x258] sm:$0xff] %v1368
        %1625 = vst [vmem:[%s261 + $0x260] sm:$0xff] %v1369
        %1626 = vst [vmem:[%s261 + $0x268] sm:$0xff] %v1370
        %1627 = vst [vmem:[%s261 + $0x270] sm:$0xff] %v1371
        %1628 = vst [vmem:[%s261 + $0x278] sm:$0xff] %v1372
        %1629 = vst [vmem:[%s261 + $0x280] sm:$0xff] %v1373
        %1630 = vst [vmem:[%s261 + $0x288] sm:$0xff] %v1374
        %1631 = vst [vmem:[%s261 + $0x290] sm:$0xff] %v1375
        %1632 = vst [vmem:[%s261 + $0x298] sm:$0xff] %v1376
        %1633 = vst [vmem:[%s261 + $0x2a0] sm:$0xff] %v1377
        %1634 = vst [vmem:[%s261 + $0x2a8] sm:$0xff] %v1378
        %1635 = vst [vmem:[%s261 + $0x2b0] sm:$0xff] %v1379
        %1636 = vst [vmem:[%s261 + $0x2b8] sm:$0xff] %v1380
        %1637 = vst [vmem:[%s261 + $0x2c0] sm:$0xff] %v1381
        %1638 = vst [vmem:[%s261 + $0x2c8] sm:$0xff] %v1382
        %1639 = vst [vmem:[%s261 + $0x2d0] sm:$0xff] %v1383
        %1640 = vst [vmem:[%s261 + $0x2d8] sm:$0xff] %v1384
        %1641 = vst [vmem:[%s261 + $0x2e0] sm:$0xff] %v1385
        %1642 = vst [vmem:[%s261 + $0x2e8] sm:$0xff] %v1386
        %1643 = vst [vmem:[%s261 + $0x2f0] sm:$0xff] %v1387
        %1644 = vst [vmem:[%s261 + $0x2f8] sm:$0xff] %v1388
        %1645 = vst [vmem:[%s261 + $0x300] sm:$0xff] %v1389
        %1646 = vst [vmem:[%s261 + $0x308] sm:$0xff] %v1390
        %1647 = vst [vmem:[%s261 + $0x310] sm:$0xff] %v1391
        %1648 = vst [vmem:[%s261 + $0x318] sm:$0xff] %v1392
        %1649 = vst [vmem:[%s261 + $0x320] sm:$0xff] %v1393
        %1650 = vst [vmem:[%s261 + $0x328] sm:$0xff] %v1394
        %1651 = vst [vmem:[%s261 + $0x330] sm:$0xff] %v1395
        %1652 = vst [vmem:[%s261 + $0x338] sm:$0xff] %v1396
        %1653 = vst [vmem:[%s261 + $0x340] sm:$0xff] %v1397
        %1654 = vst [vmem:[%s261 + $0x348] sm:$0xff] %v1398
        %1655 = vst [vmem:[%s261 + $0x350] sm:$0xff] %v1399
        %1656 = vst [vmem:[%s261 + $0x358] sm:$0xff] %v1400
        %1657 = vst [vmem:[%s261 + $0x360] sm:$0xff] %v1401
        %1658 = vst [vmem:[%s261 + $0x368] sm:$0xff] %v1402
        %1659 = vst [vmem:[%s261 + $0x370] sm:$0xff] %v1403
        %1660 = vst [vmem:[%s261 + $0x378] sm:$0xff] %v1404
        %1661 = vst [vmem:[%s261 + $0x380] sm:$0xff] %v1405
        %1662 = vst [vmem:[%s261 + $0x388] sm:$0xff] %v1406
        %1663 = vst [vmem:[%s261 + $0x390] sm:$0xff] %v1407
        %1664 = vst [vmem:[%s261 + $0x398] sm:$0xff] %v1408
        %1665 = vst [vmem:[%s261 + $0x3a0] sm:$0xff] %v1409
        %1666 = vst [vmem:[%s261 + $0x3a8] sm:$0xff] %v1410
        %1667 = vst [vmem:[%s261 + $0x3b0] sm:$0xff] %v1411
        %1668 = vst [vmem:[%s261 + $0x3b8] sm:$0xff] %v1412
        %1669 = vst [vmem:[%s261 + $0x3c0] sm:$0xff] %v1413
        %1670 = vst [vmem:[%s261 + $0x3c8] sm:$0xff] %v1414
        %1671 = vst [vmem:[%s261 + $0x3d0] sm:$0xff] %v1415
        %1672 = vst [vmem:[%s261 + $0x3d8] sm:$0xff] %v1416
        %1673 = vst [vmem:[%s261 + $0x3e0] sm:$0xff] %v1417
        %1674 = vst [vmem:[%s261 + $0x3e8] sm:$0xff] %v1418
        %1675 = vst [vmem:[%s261 + $0x3f0] sm:$0xff] %v1419
        %1676 = vst [vmem:[%s261 + $0x3f8] sm:$0xff] %v1420
        %1677 = vst [vmem:[%s261 + $0x400] sm:$0xff] %v1421
        %1678 = vst [vmem:[%s261 + $0x408] sm:$0xff] %v1422
        %1679 = vst [vmem:[%s261 + $0x410] sm:$0xff] %v1423
        %1680 = vst [vmem:[%s261 + $0x418] sm:$0xff] %v1424
        %1681 = vst [vmem:[%s261 + $0x420] sm:$0xff] %v1425
        %1682 = vst [vmem:[%s261 + $0x428] sm:$0xff] %v1426
        %1683 = vst [vmem:[%s261 + $0x430] sm:$0xff] %v1427
        %1684 = vst [vmem:[%s261 + $0x438] sm:$0xff] %v1428
        %1685 = vst [vmem:[%s261 + $0x440] sm:$0xff] %v1429
        %1686 = vst [vmem:[%s261 + $0x448] sm:$0xff] %v1430
        %1687 = vst [vmem:[%s261 + $0x450] sm:$0xff] %v1431
        %1688 = vst [vmem:[%s261 + $0x458] sm:$0xff] %v1432
        %1689 = vst [vmem:[%s261 + $0x460] sm:$0xff] %v1433
        %1690 = vst [vmem:[%s261 + $0x468] sm:$0xff] %v1434
        %1691 = vst [vmem:[%s261 + $0x470] sm:$0xff] %v1435
        %1692 = vst [vmem:[%s261 + $0x478] sm:$0xff] %v1436
        %1693 = vst [vmem:[%s261 + $0x480] sm:$0xff] %v1437
        %1694 = vst [vmem:[%s261 + $0x488] sm:$0xff] %v1438
        %1695 = vst [vmem:[%s261 + $0x490] sm:$0xff] %v1439
        %1696 = vst [vmem:[%s261 + $0x498] sm:$0xff] %v1440
        %1697 = vst [vmem:[%s261 + $0x4a0] sm:$0xff] %v1441
        %1698 = vst [vmem:[%s261 + $0x4a8] sm:$0xff] %v1442
        %1699 = vst [vmem:[%s261 + $0x4b0] sm:$0xff] %v1443
        %1700 = vst [vmem:[%s261 + $0x4b8] sm:$0xff] %v1444
        %1701 = vst [vmem:[%s261 + $0x4c0] sm:$0xff] %v1445
        %1702 = vst [vmem:[%s261 + $0x4c8] sm:$0xff] %v1446
        %1703 = vst [vmem:[%s261 + $0x4d0] sm:$0xff] %v1447
        %1704 = vst [vmem:[%s261 + $0x4d8] sm:$0xff] %v1448
        %1705 = vst [vmem:[%s261 + $0x4e0] sm:$0xff] %v1449
        %1706 = vst [vmem:[%s261 + $0x4e8] sm:$0xff] %v1450
        %1707 = vst [vmem:[%s261 + $0x4f0] sm:$0xff] %v1451
        %1708 = vst [vmem:[%s261 + $0x4f8] sm:$0xff] %v1452
        %1709 = vst [vmem:[%s261 + $0x500] sm:$0xff] %v1453
        %1710 = vst [vmem:[%s261 + $0x508] sm:$0xff] %v1454
        %1711 = vst [vmem:[%s261 + $0x510] sm:$0xff] %v1455
        %1712 = vst [vmem:[%s261 + $0x518] sm:$0xff] %v1456
        %1713 = vst [vmem:[%s261 + $0x520] sm:$0xff] %v1457
        %1714 = vst [vmem:[%s261 + $0x528] sm:$0xff] %v1458
        %1715 = vst [vmem:[%s261 + $0x530] sm:$0xff] %v1459
        %1716 = vst [vmem:[%s261 + $0x538] sm:$0xff] %v1460
        %1717 = vst [vmem:[%s261 + $0x540] sm:$0xff] %v1461
        %1718 = vst [vmem:[%s261 + $0x548] sm:$0xff] %v1462
        %1719 = vst [vmem:[%s261 + $0x550] sm:$0xff] %v1463
        %1720 = vst [vmem:[%s261 + $0x558] sm:$0xff] %v1464
        %1721 = vst [vmem:[%s261 + $0x560] sm:$0xff] %v1465
        %1722 = vst [vmem:[%s261 + $0x568] sm:$0xff] %v1466
        %1723 = vst [vmem:[%s261 + $0x570] sm:$0xff] %v1467
        %1724 = vst [vmem:[%s261 + $0x578] sm:$0xff] %v1468
        %1725 = vst [vmem:[%s261 + $0x580] sm:$0xff] %v1469
        %1726 = vst [vmem:[%s261 + $0x588] sm:$0xff] %v1470
        %1727 = vst [vmem:[%s261 + $0x590] sm:$0xff] %v1471
        %1728 = vst [vmem:[%s261 + $0x598] sm:$0xff] %v1472
        %1729 = vst [vmem:[%s261 + $0x5a0] sm:$0xff] %v1473
        %1730 = vst [vmem:[%s261 + $0x5a8] sm:$0xff] %v1474
        %1731 = vst [vmem:[%s261 + $0x5b0] sm:$0xff] %v1475
        %1732 = vst [vmem:[%s261 + $0x5b8] sm:$0xff] %v1476
        %1733 = vst [vmem:[%s261 + $0x5c0] sm:$0xff] %v1477
        %1734 = vst [vmem:[%s261 + $0x5c8] sm:$0xff] %v1478
        %1735 = vst [vmem:[%s261 + $0x5d0] sm:$0xff] %v1479
        %1736 = vst [vmem:[%s261 + $0x5d8] sm:$0xff] %v1480
        %1737 = vst [vmem:[%s261 + $0x5e0] sm:$0xff] %v1481
        %1738 = vst [vmem:[%s261 + $0x5e8] sm:$0xff] %v1482
        %1739 = vst [vmem:[%s261 + $0x5f0] sm:$0xff] %v1483
        %1740 = vst [vmem:[%s261 + $0x5f8] sm:$0xff] %v1484
        %1741 = vst [vmem:[%s261 + $0x600] sm:$0xff] %v1485
        %1742 = vst [vmem:[%s261 + $0x608] sm:$0xff] %v1486
        %1743 = vst [vmem:[%s261 + $0x610] sm:$0xff] %v1487
        %1744 = vst [vmem:[%s261 + $0x618] sm:$0xff] %v1488
        %1745 = vst [vmem:[%s261 + $0x620] sm:$0xff] %v1489
        %1746 = vst [vmem:[%s261 + $0x628] sm:$0xff] %v1490
        %1747 = vst [vmem:[%s261 + $0x630] sm:$0xff] %v1491
        %1748 = vst [vmem:[%s261 + $0x638] sm:$0xff] %v1492
        %1749 = vst [vmem:[%s261 + $0x640] sm:$0xff] %v1493
        %1750 = vst [vmem:[%s261 + $0x648] sm:$0xff] %v1494
        %1751 = vst [vmem:[%s261 + $0x650] sm:$0xff] %v1495
        %1752 = vst [vmem:[%s261 + $0x658] sm:$0xff] %v1496
        %1753 = vst [vmem:[%s261 + $0x660] sm:$0xff] %v1497
        %1754 = vst [vmem:[%s261 + $0x668] sm:$0xff] %v1498
        %1755 = vst [vmem:[%s261 + $0x670] sm:$0xff] %v1499
        %1756 = vst [vmem:[%s261 + $0x678] sm:$0xff] %v1500
        %1757 = vst [vmem:[%s261 + $0x680] sm:$0xff] %v1501
        %1758 = vst [vmem:[%s261 + $0x688] sm:$0xff] %v1502
        %1759 = vst [vmem:[%s261 + $0x690] sm:$0xff] %v1503
        %1760 = vst [vmem:[%s261 + $0x698] sm:$0xff] %v1504
        %1761 = vst [vmem:[%s261 + $0x6a0] sm:$0xff] %v1505
        %1762 = vst [vmem:[%s261 + $0x6a8] sm:$0xff] %v1506
        %1763 = vst [vmem:[%s261 + $0x6b0] sm:$0xff] %v1507
        %1764 = vst [vmem:[%s261 + $0x6b8] sm:$0xff] %v1508
        %1765 = vst [vmem:[%s261 + $0x6c0] sm:$0xff] %v1509
        %1766 = vst [vmem:[%s261 + $0x6c8] sm:$0xff] %v1510
        %1767 = vst [vmem:[%s261 + $0x6d0] sm:$0xff] %v1511
        %1768 = vst [vmem:[%s261 + $0x6d8] sm:$0xff] %v1512
        %1769 = vst [vmem:[%s261 + $0x6e0] sm:$0xff] %v1513
        %1770 = vst [vmem:[%s261 + $0x6e8] sm:$0xff] %v1514
        %1771 = vst [vmem:[%s261 + $0x6f0] sm:$0xff] %v1515
        %1772 = vst [vmem:[%s261 + $0x6f8] sm:$0xff] %v1516
        %1773 = vst [vmem:[%s261 + $0x700] sm:$0xff] %v1517
        %1774 = vst [vmem:[%s261 + $0x708] sm:$0xff] %v1518
        %1775 = vst [vmem:[%s261 + $0x710] sm:$0xff] %v1519
        %1776 = vst [vmem:[%s261 + $0x718] sm:$0xff] %v1520
        %1777 = vst [vmem:[%s261 + $0x720] sm:$0xff] %v1521
        %1778 = vst [vmem:[%s261 + $0x728] sm:$0xff] %v1522
        %1779 = vst [vmem:[%s261 + $0x730] sm:$0xff] %v1523
        %1780 = vst [vmem:[%s261 + $0x738] sm:$0xff] %v1524
        %1781 = vst [vmem:[%s261 + $0x740] sm:$0xff] %v1525
        %1782 = vst [vmem:[%s261 + $0x748] sm:$0xff] %v1526
        %1783 = vst [vmem:[%s261 + $0x750] sm:$0xff] %v1527
        %1784 = vst [vmem:[%s261 + $0x758] sm:$0xff] %v1528
        %1785 = vst [vmem:[%s261 + $0x760] sm:$0xff] %v1529
        %1786 = vst [vmem:[%s261 + $0x768] sm:$0xff] %v1530
        %1787 = vst [vmem:[%s261 + $0x770] sm:$0xff] %v1531
        %1788 = vst [vmem:[%s261 + $0x778] sm:$0xff] %v1532
        %1789 = vst [vmem:[%s261 + $0x780] sm:$0xff] %v1533
        %1790 = vst [vmem:[%s261 + $0x788] sm:$0xff] %v1534
        %1791 = vst [vmem:[%s261 + $0x790] sm:$0xff] %v1535
        %1792 = vst [vmem:[%s261 + $0x798] sm:$0xff] %v1536
        %1793 = vst [vmem:[%s261 + $0x7a0] sm:$0xff] %v1537
        %1794 = vst [vmem:[%s261 + $0x7a8] sm:$0xff] %v1538
        %1795 = vst [vmem:[%s261 + $0x7b0] sm:$0xff] %v1539
        %1796 = vst [vmem:[%s261 + $0x7b8] sm:$0xff] %v1540
        %1797 = vst [vmem:[%s261 + $0x7c0] sm:$0xff] %v1541
        %1798 = vst [vmem:[%s261 + $0x7c8] sm:$0xff] %v1542
        %1799 = vst [vmem:[%s261 + $0x7d0] sm:$0xff] %v1543
        %1800 = vst [vmem:[%s261 + $0x7d8] sm:$0xff] %v1544
        %1801 = vst [vmem:[%s261 + $0x7e0] sm:$0xff] %v1545
        %1802 = vst [vmem:[%s261 + $0x7e8] sm:$0xff] %v1546
        %1803 = vst [vmem:[%s261 + $0x7f0] sm:$0xff] %v1547
        %1804 = vst [vmem:[%s261 + $0x7f8] sm:$0xff] %v1548
        %s1805 = sand.u32 %s128, 1
        %s1806 = scalar_lea.sflag [#allocation6], %s1805
        %s1807 = sand.u32 %s128, 1
        %s1808 = smul.addr %s1807, 2048
        %s1809 = scalar_lea.vmem [#allocation9], %s1808
        // Predicated region
        $region45: #{tpu_custom_call.1} parent=35 // pred_check
          %p1810 = pneg %p138
        $region46: #{tpu_custom_call.1} parent=35 // pred_check_branch
          %1812 = sbr.rel (%p1810) target = $region48
        $region47: #{tpu_custom_call.1} parent=35 // pred_region
          %s1813 = smul.u32 256, %s26
          %1815 = vsyncadd %s1806, 0
          %s1816 = smul.addr %s1813, 8
          %s1817 = scalar_lea.hbm %s4, %s1816
          %s1818 = sshll.u32 %s1809, 4
          %s1819 = int_to_ptr.vmem [resolvable:$true] %s1818
          %s1820 = sshll.u32 %s1817, 4
          %s1821 = int_to_ptr.hbm [resolvable:$true] %s1820
          %1826 = dma.vmem_to_hbm [thread:$0]  %s1819, 32768, %s1821, %s1806, 128, 128, 8
        $region48: #{tpu_custom_call.1} parent=35 // pred_fallthru
          _
      $region36: #{tpu_custom_call.1} parent=5 // pred_fallthru
        _
      %p1827 = scmp.le.s32.totalorder 2, %s21
      // Predicated region
      $region49: #{tpu_custom_call.1} parent=5 // pred_check
        %p1828 = pneg %p1827
      $region50: #{tpu_custom_call.1} parent=5 // pred_check_branch
        %1830 = sbr.rel (%p1828) target = $region52
      $region51: #{tpu_custom_call.1} parent=5 // pred_region
        %s1831 = ssub.s32 %s21, 2
        // Predicated region
        $region53: #{tpu_custom_call.1} parent=51 // pred_check
          %p1832 = pneg %p144
        $region54: #{tpu_custom_call.1} parent=51 // pred_check_branch
          %1834 = sbr.rel (%p1832) target = $region56
        $region55: #{tpu_custom_call.1} parent=51 // pred_region
          %s1835 = sand.u32 %s129, 1
          %s1836 = scalar_lea.sflag [#allocation6], %s1835
          %s1837 = sand.u32 %s129, 1
          %s1838 = smul.addr %s1837, 2048
          %s1839 = scalar_lea.vmem [#allocation9], %s1838
          %1841 = dma.done %s1836, 32768
        $region56: #{tpu_custom_call.1} parent=51 // pred_fallthru
          _
      $region52: #{tpu_custom_call.1} parent=5 // pred_fallthru
        _
    $region6: #{tpu_custom_call.1} parent=1 // loop_footer
      %s25 = sadd.s32 1, %s21
    $region7: #{tpu_custom_call.1} parent=1 // loop_footer_branch
      %20 = sbr.rel target = $region3
    $region8: #{tpu_custom_call.1} parent=1 // loop_exit
      _
    %1842 = vsyncpa [#allocation5], 1
    %s1843 = scalar_lea.sflag [#allocation5], 1
    %1844 = vsyncpa %s1843, 1
    %1845 = vsyncpa [#allocation8], 1
    %s1846 = scalar_lea.sflag [#allocation8], 1
    %1847 = vsyncpa %s1846, 1
    %1848 = vsyncpa [#allocation6], 1
    %s1849 = scalar_lea.sflag [#allocation6], 1
    %1850 = vsyncpa %s1849, 1

</llo_original>
